<compile_context>
chip_gen: v7x
topology: tpu7x:2x2x1
jax: 0.10.0
libtpu: 0.0.40
codegen_flags: <defaults>
</compile_context>

<pallas_src>
import functools

import jax
import jax.numpy as jnp
from jax.experimental import pallas as pl
from jax.experimental.pallas import tpu as pltpu

HIDDEN = 512


def _round_up(x, m):
    return (x + m - 1) // m * m


def _mlp_kernel(x_ref, w1_ref, b1_ref, w2_ref, b2_ref, w3_ref, b3_ref, o_ref):
    # Fully fused 3-layer MLP on one batch tile:
    # bf16 operands on the MXU, f32 accumulation, bias + ReLU on the VPU in f32,
    # re-cast to bf16 between layers to keep the MXU at its bf16 rate.
    x = x_ref[...].astype(jnp.bfloat16)  # f32 streamed from HBM, cast in-kernel
    h1 = jnp.dot(x, w1_ref[...], preferred_element_type=jnp.float32) + b1_ref[...]
    h1 = jnp.maximum(h1, 0.0).astype(jnp.bfloat16)
    h2 = jnp.dot(h1, w2_ref[...], preferred_element_type=jnp.float32) + b2_ref[...]
    h2 = jnp.maximum(h2, 0.0).astype(jnp.bfloat16)
    out = jnp.dot(h2, w3_ref[...], preferred_element_type=jnp.float32) + b3_ref[...]
    o_ref[...] = out.astype(o_ref.dtype)


def prepare_params(params):
    """One-time parameter preparation, hoisted out of the per-call forward path.

    bf16 weights (MXU-native, stored transposed vs PyTorch: [in, out]), f32
    biases, and the class dimension of the last layer zero-padded up to a
    multiple of 128 so the kernel's output store is lane-dense.  Call once and
    reuse the result for every forward call.
    """
    w3 = params["w3"].astype(jnp.bfloat16)
    b3 = params["b3"].astype(jnp.float32)
    class_num = w3.shape[1]
    n_pad = _round_up(class_num, 128)
    if n_pad != class_num:
        w3 = jnp.pad(w3, ((0, 0), (0, n_pad - class_num)))
        b3 = jnp.pad(b3, ((0, 0), (0, n_pad - class_num)))
    return {
        "w1": params["w1"].astype(jnp.bfloat16),
        "b1": params["b1"].astype(jnp.float32),
        "w2": params["w2"].astype(jnp.bfloat16),
        "b2": params["b2"].astype(jnp.float32),
        "w3": w3,
        "b3": b3,
    }


def _select_tile_m(batch, tile_m):
    if tile_m is not None:
        return min(_round_up(tile_m, 16), _round_up(batch, 16))
    if batch >= 256:
        # >= 2 grid steps so ("parallel",) splits the batch across both v7x
        # TensorCores; cap at 512 rows/step (v5e vst slot, v7x VMEM headroom).
        return min(_round_up(pl.cdiv(batch, 2), 16), 512)
    # Small batch: single grid step, zero pipeline/step overhead.
    return _round_up(batch, 16)


def cifar10_oracle_forward(x, prepared, class_num, *, tile_m=None):
    """Run the normalize_projector MLP via a single batch-tiled Pallas call.

    x: [batch, input_size] float32
    prepared: output of prepare_params() (bf16 weights, f32 biases, padded w3/b3)
    """
    w1, b1 = prepared["w1"], prepared["b1"]
    w2, b2 = prepared["w2"], prepared["b2"]
    w3, b3 = prepared["w3"], prepared["b3"]

    batch, input_size = x.shape
    n_pad = w3.shape[1]

    tm = _select_tile_m(batch, tile_m)
    padded_batch = _round_up(batch, tm)
    if padded_batch != batch:
        x = jnp.pad(x, ((0, padded_batch - batch), (0, 0)))

    grid = (padded_batch // tm,)

    def resident(shape):
        # Constant block index: operand DMA'd once, stays resident in VMEM.
        return pl.BlockSpec(shape, lambda i: (0,) * len(shape))

    out = pl.pallas_call(
        _mlp_kernel,
        out_shape=jax.ShapeDtypeStruct((padded_batch, n_pad), jnp.float32),
        grid=grid,
        in_specs=[
            pl.BlockSpec((tm, input_size), lambda i: (i, 0)),  # x: batch-tiled, f32
            resident(w1.shape), resident(b1.shape),
            resident(w2.shape), resident(b2.shape),
            resident(w3.shape), resident(b3.shape),
        ],
        out_specs=pl.BlockSpec((tm, n_pad), lambda i: (i, 0)),
        compiler_params=pltpu.CompilerParams(
            dimension_semantics=("parallel",)),
    )(x, w1, b1, w2, b2, w3, b3)

    # Padded class columns are exact zeros (zero-padded w3/b3); padded batch
    # rows are discarded.  Slice back to the logical logits shape.
    return out[:batch, :class_num]


def init_params(key, input_size, class_num, hidden=HIDDEN):
    """Deterministic synthetic parameter init (PyTorch-Linear-like uniform)."""
    ks = jax.random.split(key, 6)

    def linear(kw, kb, fan_in, fan_out):
        bound = 1.0 / jnp.sqrt(float(fan_in))
        w = jax.random.uniform(kw, (fan_in, fan_out), jnp.float32, -bound, bound)
        b = jax.random.uniform(kb, (1, fan_out), jnp.float32, -bound, bound)
        return w, b

    w1, b1 = linear(ks[0], ks[1], input_size, hidden)
    w2, b2 = linear(ks[2], ks[3], hidden, hidden)
    w3, b3 = linear(ks[4], ks[5], hidden, class_num)
    return {"w1": w1, "b1": b1, "w2": w2, "b2": b2, "w3": w3, "b3": b3}


def _reference_forward(x, p):
    # Precision-matched reference: same bf16 rounding of inputs/weights,
    # f32 math everywhere else.
    f32 = jnp.float32
    xb = x.astype(jnp.bfloat16).astype(f32)
    w1 = p["w1"].astype(jnp.bfloat16).astype(f32)
    w2 = p["w2"].astype(jnp.bfloat16).astype(f32)
    w3 = p["w3"].astype(jnp.bfloat16).astype(f32)
    h1 = jnp.maximum(xb @ w1 + p["b1"], 0.0)
    h1 = h1.astype(jnp.bfloat16).astype(f32)
    h2 = jnp.maximum(h1 @ w2 + p["b2"], 0.0)
    h2 = h2.astype(jnp.bfloat16).astype(f32)
    return h2 @ w3 + p["b3"]


if __name__ == "__main__":
    key = jax.random.PRNGKey(0)
    k_x, k_p = jax.random.split(key)

    batch = 256        # two 128-row grid steps -> both TCs on v7x
    input_size = 32    # the "input_size" constructor arg (flattened features)
    class_num = 10     # CIFAR-10 classes

    x = jax.random.normal(k_x, (batch, input_size), dtype=jnp.float32)
    params = init_params(k_p, input_size, class_num)

    # One-time parameter prep (hoisted out of the forward path), then a jitted
    # forward that closes over the prepared params.
    prepared = jax.block_until_ready(prepare_params(params))
    forward = jax.jit(functools.partial(
        cifar10_oracle_forward, prepared=prepared, class_num=class_num))

    logits = jax.block_until_ready(forward(x))

    ref = _reference_forward(x, params)
    assert logits.shape == (batch, class_num)
    assert jnp.allclose(logits, ref, atol=5e-2, rtol=5e-2), (
        float(jnp.max(jnp.abs(logits - ref))))

    print("KERNEL_OK")
</pallas_src>

<mosaic_0001>
module attributes {stable_mosaic.version = 11 : i64} {
  func.func @_mlp_kernel(%arg0: i32, %arg1: memref<128x32xf32, #tpu.memory_space<vmem>>, %arg2: memref<32x512xbf16, #tpu.memory_space<vmem>>, %arg3: memref<1x512xf32, #tpu.memory_space<vmem>>, %arg4: memref<512x512xbf16, #tpu.memory_space<vmem>>, %arg5: memref<1x512xf32, #tpu.memory_space<vmem>>, %arg6: memref<512x128xbf16, #tpu.memory_space<vmem>>, %arg7: memref<1x128xf32, #tpu.memory_space<vmem>>, %arg8: memref<128x128xf32, #tpu.memory_space<vmem>>) attributes {dimension_semantics = [#tpu.dimension_semantics<parallel>], iteration_bounds = array<i64: 2>, scalar_prefetch = 0 : i64, scratch_operands = 0 : i64, tpu.core_type = #tpu.core_type<tc>, window_params = [{transform_indices = @transform_0, window_bounds = array<i64: 128, 32>}, {pipeline_mode = #tpu.pipeline_mode<synchronous>, transform_indices = @transform_1, window_bounds = array<i64: 32, 512>}, {pipeline_mode = #tpu.pipeline_mode<synchronous>, transform_indices = @transform_2, window_bounds = array<i64: 1, 512>}, {pipeline_mode = #tpu.pipeline_mode<synchronous>, transform_indices = @transform_3, window_bounds = array<i64: 512, 512>}, {pipeline_mode = #tpu.pipeline_mode<synchronous>, transform_indices = @transform_4, window_bounds = array<i64: 1, 512>}, {pipeline_mode = #tpu.pipeline_mode<synchronous>, transform_indices = @transform_5, window_bounds = array<i64: 512, 128>}, {pipeline_mode = #tpu.pipeline_mode<synchronous>, transform_indices = @transform_6, window_bounds = array<i64: 1, 128>}, {transform_indices = @transform_7, window_bounds = array<i64: 128, 128>}]} {
    %c0 = arith.constant 0 : index
    %c0_0 = arith.constant 0 : index
    %0 = vector.load %arg1[%c0, %c0_0] : memref<128x32xf32, #tpu.memory_space<vmem>>, vector<128x32xf32>
    %1 = arith.truncf %0 : vector<128x32xf32> to vector<128x32xbf16>
    %c0_1 = arith.constant 0 : index
    %c0_2 = arith.constant 0 : index
    %2 = vector.load %arg2[%c0_1, %c0_2] : memref<32x512xbf16, #tpu.memory_space<vmem>>, vector<32x512xbf16>
    %cst = arith.constant dense<0.000000e+00> : vector<128x512xf32>
    %3 = tpu.matmul %1, %2, %cst {dimension_numbers = #tpu.dot_dimension_numbers<[1], [0], [0], [1], [0, 0, 1, 1], [], []>} : vector<128x32xbf16>, vector<32x512xbf16>, vector<128x512xf32> -> vector<128x512xf32>
    %c0_3 = arith.constant 0 : index
    %c0_4 = arith.constant 0 : index
    %4 = vector.load %arg3[%c0_3, %c0_4] : memref<1x512xf32, #tpu.memory_space<vmem>>, vector<1x512xf32>
    %5 = vector.broadcast %4 : vector<1x512xf32> to vector<128x512xf32>
    %6 = arith.addf %3, %5 : vector<128x512xf32>
    %cst_5 = arith.constant 0.000000e+00 : f32
    %7 = vector.broadcast %cst_5 : f32 to vector<128x512xf32>
    %8 = arith.maximumf %6, %7 : vector<128x512xf32>
    %9 = arith.truncf %8 : vector<128x512xf32> to vector<128x512xbf16>
    %c0_6 = arith.constant 0 : index
    %c0_7 = arith.constant 0 : index
    %10 = vector.load %arg4[%c0_6, %c0_7] : memref<512x512xbf16, #tpu.memory_space<vmem>>, vector<512x512xbf16>
    %cst_8 = arith.constant dense<0.000000e+00> : vector<128x512xf32>
    %11 = tpu.matmul %9, %10, %cst_8 {dimension_numbers = #tpu.dot_dimension_numbers<[1], [0], [0], [1], [0, 0, 1, 1], [], []>} : vector<128x512xbf16>, vector<512x512xbf16>, vector<128x512xf32> -> vector<128x512xf32>
    %c0_9 = arith.constant 0 : index
    %c0_10 = arith.constant 0 : index
    %12 = vector.load %arg5[%c0_9, %c0_10] : memref<1x512xf32, #tpu.memory_space<vmem>>, vector<1x512xf32>
    %13 = vector.broadcast %12 : vector<1x512xf32> to vector<128x512xf32>
    %14 = arith.addf %11, %13 : vector<128x512xf32>
    %cst_11 = arith.constant 0.000000e+00 : f32
    %15 = vector.broadcast %cst_11 : f32 to vector<128x512xf32>
    %16 = arith.maximumf %14, %15 : vector<128x512xf32>
    %17 = arith.truncf %16 : vector<128x512xf32> to vector<128x512xbf16>
    %c0_12 = arith.constant 0 : index
    %c0_13 = arith.constant 0 : index
    %18 = vector.load %arg6[%c0_12, %c0_13] : memref<512x128xbf16, #tpu.memory_space<vmem>>, vector<512x128xbf16>
    %cst_14 = arith.constant dense<0.000000e+00> : vector<128x128xf32>
    %19 = tpu.matmul %17, %18, %cst_14 {dimension_numbers = #tpu.dot_dimension_numbers<[1], [0], [0], [1], [0, 0, 1, 1], [], []>} : vector<128x512xbf16>, vector<512x128xbf16>, vector<128x128xf32> -> vector<128x128xf32>
    %c0_15 = arith.constant 0 : index
    %c0_16 = arith.constant 0 : index
    %20 = vector.load %arg7[%c0_15, %c0_16] : memref<1x128xf32, #tpu.memory_space<vmem>>, vector<1x128xf32>
    %21 = vector.broadcast %20 : vector<1x128xf32> to vector<128x128xf32>
    %22 = arith.addf %19, %21 : vector<128x128xf32>
    %c0_17 = arith.constant 0 : index
    %c0_18 = arith.constant 0 : index
    %23 = vector.load %arg8[%c0_17, %c0_18] : memref<128x128xf32, #tpu.memory_space<vmem>>, vector<128x128xf32>
    tpu.vector_store %arg8[%c0_17, %c0_18], %22 {strides = array<i32>} : memref<128x128xf32, #tpu.memory_space<vmem>>, vector<128x128xf32>,
    return
  }
  func.func @transform_0(%arg0: i32) -> (i32, i32) {
    %c0_i32 = arith.constant 0 : i32
    %c0_i32_0 = arith.constant 0 : i32
    return %arg0, %c0_i32 : i32, i32
  }
  func.func @transform_1(%arg0: i32) -> (i32, i32) {
    %c0_i32 = arith.constant 0 : i32
    %c0_i32_0 = arith.constant 0 : i32
    %c0_i32_1 = arith.constant 0 : i32
    return %c0_i32, %c0_i32_0 : i32, i32
  }
  func.func @transform_2(%arg0: i32) -> (i32, i32) {
    %c0_i32 = arith.constant 0 : i32
    %c0_i32_0 = arith.constant 0 : i32
    %c0_i32_1 = arith.constant 0 : i32
    return %c0_i32, %c0_i32_0 : i32, i32
  }
  func.func @transform_3(%arg0: i32) -> (i32, i32) {
    %c0_i32 = arith.constant 0 : i32
    %c0_i32_0 = arith.constant 0 : i32
    %c0_i32_1 = arith.constant 0 : i32
    return %c0_i32, %c0_i32_0 : i32, i32
  }
  func.func @transform_4(%arg0: i32) -> (i32, i32) {
    %c0_i32 = arith.constant 0 : i32
    %c0_i32_0 = arith.constant 0 : i32
    %c0_i32_1 = arith.constant 0 : i32
    return %c0_i32, %c0_i32_0 : i32, i32
  }
  func.func @transform_5(%arg0: i32) -> (i32, i32) {
    %c0_i32 = arith.constant 0 : i32
    %c0_i32_0 = arith.constant 0 : i32
    %c0_i32_1 = arith.constant 0 : i32
    return %c0_i32, %c0_i32_0 : i32, i32
  }
  func.func @transform_6(%arg0: i32) -> (i32, i32) {
    %c0_i32 = arith.constant 0 : i32
    %c0_i32_0 = arith.constant 0 : i32
    %c0_i32_1 = arith.constant 0 : i32
    return %c0_i32, %c0_i32_0 : i32, i32
  }
  func.func @transform_7(%arg0: i32) -> (i32, i32) {
    %c0_i32 = arith.constant 0 : i32
    %c0_i32_0 = arith.constant 0 : i32
    return %arg0, %c0_i32 : i32, i32
  }
}

</mosaic_0001>

<llo_original>
// kernel: cifar10_oracle_forward.1
$region0: #{cifar10_oracle_forward.1}
  #allocation0 [shape = 'u32[]', space=smem, size = 0x4, offset = 0x4, fixed_abs, tag = 'smem constant byte address 0x4 - core index']
  #allocation1 [shape = 'u32[144,128]{1,0:T(1,128)}', space=vmem, size = 0x12000, scoped, tag = 'internal scratch']
  %s0 = inlined_call_operand.vmem [shape: f32[256,32], index: 0, kind: input, shape index: {}]
  %s1 = inlined_call_operand.vmem [shape: bf16[32,512], index: 1, kind: input, shape index: {}]
  %s2 = inlined_call_operand.vmem [shape: f32[1,512], index: 2, kind: input, shape index: {}]
  %s3 = inlined_call_operand.vmem [shape: bf16[512,512], index: 3, kind: input, shape index: {}]
  %s4 = inlined_call_operand.vmem [shape: f32[1,512], index: 4, kind: input, shape index: {}]
  %s5 = inlined_call_operand.vmem [shape: bf16[512,128], index: 5, kind: input, shape index: {}]
  %s6 = inlined_call_operand.vmem [shape: f32[1,128], index: 6, kind: input, shape index: {}]
  %s7 = inlined_call_operand.vmem [shape: f32[256,128], index: 7, kind: output, shape index: {}]
  %s8 = sld [smem:[#allocation0]]
  $region61: #{cifar10_oracle_forward.1} parent=0
    _
  %s10 = ssub.s32 1, %s8
  %s11 = scalar_select 0, %s10, %s8
  loop: start=0, step=1, limit=4
  $region2: #{cifar10_oracle_forward.1} parent=0 // loop_pre_header
    _
  $region3: #{cifar10_oracle_forward.1} parent=0 // loop_header
    %s13 = sphi 0, %s17
    %p14 = scmp.ge.s32.totalorder %s13, 4
    %s23 = sphi 0, %s25
    %s26 = sphi 0, %s23
    %s27 = sphi 0, %s26
    %s43 = sphi 0, %s27
    %s47 = sphi 0, %s47
    %s49 = sphi 0, %s47
    %s50 = sphi 0, %s49
    %s64 = sphi 0, %s50
    %s68 = sphi 0, %s68
    %s70 = sphi 0, %s68
    %s71 = sphi 0, %s70
    %s85 = sphi 0, %s71
    %s89 = sphi 0, %s89
    %s91 = sphi 0, %s89
    %s92 = sphi 0, %s91
    %s106 = sphi 0, %s92
    %s110 = sphi 0, %s110
    %s112 = sphi 0, %s110
    %s113 = sphi 0, %s112
    %s127 = sphi 0, %s113
    %s131 = sphi 0, %s131
    %s133 = sphi 0, %s131
    %s134 = sphi 0, %s133
    %s148 = sphi 0, %s134
    %s152 = sphi 0, %s152
    %s154 = sphi 0, %s152
    %s155 = sphi 0, %s154
    %s169 = sphi 0, %s155
    %s175 = sphi 0, %s177
    %s178 = sphi 0, %s175
    %s179 = sphi 0, %s178
    %s195 = sphi 0, %s179
  $region4: #{cifar10_oracle_forward.1} parent=0 // loop_header_branch
    %16 = sbr.rel (%p14) target = $region8
  $region5: #{cifar10_oracle_forward.1} parent=0 // loop_body
    %s18 = ssub.s32 %s13, 1
    %s19 = ssub.s32 %s13, 2
    %s20 = sadd.s32 %s13, 1
    %s21 = ssub.s32 %s13, %s20
    %p22 = scmp.eq.s32.totalorder %s21, 0
    %s24 = sadd.s32 %s23, 1
    %s25 = scalar_select %p22, %s23, %s24
    %p28 = pneg %p22
    %p29 = scmp.eq.s32.totalorder %s13, 1
    %p30 = por %p28, %p29
    %p31 = scmp.ne.s32.totalorder %s23, %s26
    %p32 = scmp.eq.s32.totalorder %s13, 0
    %p33 = por %p31, %p32
    %p34 = scmp.ne.s32.totalorder %s23, %s26
    %p35 = scmp.eq.s32.totalorder %s18, 1
    %p36 = por %p34, %p35
    %p37 = scmp.ne.s32.totalorder %s26, %s27
    %p38 = scmp.eq.s32.totalorder %s18, 0
    %p39 = por %p37, %p38
    %p40 = scmp.ne.s32.totalorder %s26, %s27
    %p41 = scmp.eq.s32.totalorder %s19, 1
    %p42 = por %p40, %p41
    %p44 = scmp.ne.s32.totalorder %s27, %s43
    %p45 = scmp.eq.s32.totalorder %s19, 0
    %p46 = por %p44, %p45
    %s48 = sadd.s32 %s47, 1
    %p51 = scmp.eq.s32.totalorder %s13, 1
    %p52 = scmp.ne.s32.totalorder %s47, %s49
    %p53 = scmp.eq.s32.totalorder %s13, 0
    %p54 = por %p52, %p53
    %p55 = scmp.ne.s32.totalorder %s47, %s49
    %p56 = scmp.eq.s32.totalorder %s18, 1
    %p57 = por %p55, %p56
    %p58 = scmp.ne.s32.totalorder %s49, %s50
    %p59 = scmp.eq.s32.totalorder %s18, 0
    %p60 = por %p58, %p59
    %p61 = scmp.ne.s32.totalorder %s49, %s50
    %p62 = scmp.eq.s32.totalorder %s19, 1
    %p63 = por %p61, %p62
    %p65 = scmp.ne.s32.totalorder %s50, %s64
    %p66 = scmp.eq.s32.totalorder %s19, 0
    %p67 = por %p65, %p66
    %s69 = sadd.s32 %s68, 1
    %p72 = scmp.eq.s32.totalorder %s13, 1
    %p73 = scmp.ne.s32.totalorder %s68, %s70
    %p74 = scmp.eq.s32.totalorder %s13, 0
    %p75 = por %p73, %p74
    %p76 = scmp.ne.s32.totalorder %s68, %s70
    %p77 = scmp.eq.s32.totalorder %s18, 1
    %p78 = por %p76, %p77
    %p79 = scmp.ne.s32.totalorder %s70, %s71
    %p80 = scmp.eq.s32.totalorder %s18, 0
    %p81 = por %p79, %p80
    %p82 = scmp.ne.s32.totalorder %s70, %s71
    %p83 = scmp.eq.s32.totalorder %s19, 1
    %p84 = por %p82, %p83
    %p86 = scmp.ne.s32.totalorder %s71, %s85
    %p87 = scmp.eq.s32.totalorder %s19, 0
    %p88 = por %p86, %p87
    %s90 = sadd.s32 %s89, 1
    %p93 = scmp.eq.s32.totalorder %s13, 1
    %p94 = scmp.ne.s32.totalorder %s89, %s91
    %p95 = scmp.eq.s32.totalorder %s13, 0
    %p96 = por %p94, %p95
    %p97 = scmp.ne.s32.totalorder %s89, %s91
    %p98 = scmp.eq.s32.totalorder %s18, 1
    %p99 = por %p97, %p98
    %p100 = scmp.ne.s32.totalorder %s91, %s92
    %p101 = scmp.eq.s32.totalorder %s18, 0
    %p102 = por %p100, %p101
    %p103 = scmp.ne.s32.totalorder %s91, %s92
    %p104 = scmp.eq.s32.totalorder %s19, 1
    %p105 = por %p103, %p104
    %p107 = scmp.ne.s32.totalorder %s92, %s106
    %p108 = scmp.eq.s32.totalorder %s19, 0
    %p109 = por %p107, %p108
    %s111 = sadd.s32 %s110, 1
    %p114 = scmp.eq.s32.totalorder %s13, 1
    %p115 = scmp.ne.s32.totalorder %s110, %s112
    %p116 = scmp.eq.s32.totalorder %s13, 0
    %p117 = por %p115, %p116
    %p118 = scmp.ne.s32.totalorder %s110, %s112
    %p119 = scmp.eq.s32.totalorder %s18, 1
    %p120 = por %p118, %p119
    %p121 = scmp.ne.s32.totalorder %s112, %s113
    %p122 = scmp.eq.s32.totalorder %s18, 0
    %p123 = por %p121, %p122
    %p124 = scmp.ne.s32.totalorder %s112, %s113
    %p125 = scmp.eq.s32.totalorder %s19, 1
    %p126 = por %p124, %p125
    %p128 = scmp.ne.s32.totalorder %s113, %s127
    %p129 = scmp.eq.s32.totalorder %s19, 0
    %p130 = por %p128, %p129
    %s132 = sadd.s32 %s131, 1
    %p135 = scmp.eq.s32.totalorder %s13, 1
    %p136 = scmp.ne.s32.totalorder %s131, %s133
    %p137 = scmp.eq.s32.totalorder %s13, 0
    %p138 = por %p136, %p137
    %p139 = scmp.ne.s32.totalorder %s131, %s133
    %p140 = scmp.eq.s32.totalorder %s18, 1
    %p141 = por %p139, %p140
    %p142 = scmp.ne.s32.totalorder %s133, %s134
    %p143 = scmp.eq.s32.totalorder %s18, 0
    %p144 = por %p142, %p143
    %p145 = scmp.ne.s32.totalorder %s133, %s134
    %p146 = scmp.eq.s32.totalorder %s19, 1
    %p147 = por %p145, %p146
    %p149 = scmp.ne.s32.totalorder %s134, %s148
    %p150 = scmp.eq.s32.totalorder %s19, 0
    %p151 = por %p149, %p150
    %s153 = sadd.s32 %s152, 1
    %p156 = scmp.eq.s32.totalorder %s13, 1
    %p157 = scmp.ne.s32.totalorder %s152, %s154
    %p158 = scmp.eq.s32.totalorder %s13, 0
    %p159 = por %p157, %p158
    %p160 = scmp.ne.s32.totalorder %s152, %s154
    %p161 = scmp.eq.s32.totalorder %s18, 1
    %p162 = por %p160, %p161
    %p163 = scmp.ne.s32.totalorder %s154, %s155
    %p164 = scmp.eq.s32.totalorder %s18, 0
    %p165 = por %p163, %p164
    %p166 = scmp.ne.s32.totalorder %s154, %s155
    %p167 = scmp.eq.s32.totalorder %s19, 1
    %p168 = por %p166, %p167
    %p170 = scmp.ne.s32.totalorder %s155, %s169
    %p171 = scmp.eq.s32.totalorder %s19, 0
    %p172 = por %p170, %p171
    %s173 = ssub.s32 %s13, %s20
    %p174 = scmp.eq.s32.totalorder %s173, 0
    %s176 = sadd.s32 %s175, 1
    %s177 = scalar_select %p174, %s175, %s176
    %p180 = pneg %p174
    %p181 = scmp.eq.s32.totalorder %s13, 1
    %p182 = por %p180, %p181
    %p183 = scmp.ne.s32.totalorder %s175, %s178
    %p184 = scmp.eq.s32.totalorder %s13, 0
    %p185 = por %p183, %p184
    %p186 = scmp.ne.s32.totalorder %s175, %s178
    %p187 = scmp.eq.s32.totalorder %s18, 1
    %p188 = por %p186, %p187
    %p189 = scmp.ne.s32.totalorder %s178, %s179
    %p190 = scmp.eq.s32.totalorder %s18, 0
    %p191 = por %p189, %p190
    %p192 = scmp.ne.s32.totalorder %s178, %s179
    %p193 = scmp.eq.s32.totalorder %s19, 1
    %p194 = por %p192, %p193
    %p196 = scmp.ne.s32.totalorder %s179, %s195
    %p197 = scmp.eq.s32.totalorder %s19, 0
    %p198 = por %p196, %p197
    %p199 = scmp.le.s32.totalorder 1, %s13
    %p200 = scmp.lt.s32.totalorder %s13, 3
    %p201 = pnand %p199, %p200
    %p202 = pneg %p201
    // Predicated region
    $region9: #{cifar10_oracle_forward.1} parent=5 // pred_check
      _
    $region10: #{cifar10_oracle_forward.1} parent=5 // pred_check_branch
      %204 = sbr.rel (%p201) target = $region12
    $region11: #{cifar10_oracle_forward.1} parent=5 // pred_region
      %s205 = ssub.s32 %s13, 1
      // Predicated region
      $region13: #{cifar10_oracle_forward.1} parent=11 // pred_check
        %p206 = pneg %p60
      $region14: #{cifar10_oracle_forward.1} parent=11 // pred_check_branch
        %208 = sbr.rel (%p206) target = $region16
      $region15: #{cifar10_oracle_forward.1} parent=11 // pred_region
        _
      $region16: #{cifar10_oracle_forward.1} parent=11 // pred_fallthru
        _
      // Predicated region
      $region17: #{cifar10_oracle_forward.1} parent=11 // pred_check
        %p209 = pneg %p81
      $region18: #{cifar10_oracle_forward.1} parent=11 // pred_check_branch
        %211 = sbr.rel (%p209) target = $region20
      $region19: #{cifar10_oracle_forward.1} parent=11 // pred_region
        _
      $region20: #{cifar10_oracle_forward.1} parent=11 // pred_fallthru
        _
      // Predicated region
      $region21: #{cifar10_oracle_forward.1} parent=11 // pred_check
        %p212 = pneg %p102
      $region22: #{cifar10_oracle_forward.1} parent=11 // pred_check_branch
        %214 = sbr.rel (%p212) target = $region24
      $region23: #{cifar10_oracle_forward.1} parent=11 // pred_region
        _
      $region24: #{cifar10_oracle_forward.1} parent=11 // pred_fallthru
        _
      // Predicated region
      $region25: #{cifar10_oracle_forward.1} parent=11 // pred_check
        %p215 = pneg %p123
      $region26: #{cifar10_oracle_forward.1} parent=11 // pred_check_branch
        %217 = sbr.rel (%p215) target = $region28
      $region27: #{cifar10_oracle_forward.1} parent=11 // pred_region
        _
      $region28: #{cifar10_oracle_forward.1} parent=11 // pred_fallthru
        _
      // Predicated region
      $region29: #{cifar10_oracle_forward.1} parent=11 // pred_check
        %p218 = pneg %p144
      $region30: #{cifar10_oracle_forward.1} parent=11 // pred_check_branch
        %220 = sbr.rel (%p218) target = $region32
      $region31: #{cifar10_oracle_forward.1} parent=11 // pred_region
        _
      $region32: #{cifar10_oracle_forward.1} parent=11 // pred_fallthru
        _
      // Predicated region
      $region33: #{cifar10_oracle_forward.1} parent=11 // pred_check
        %p221 = pneg %p165
      $region34: #{cifar10_oracle_forward.1} parent=11 // pred_check_branch
        %223 = sbr.rel (%p221) target = $region36
      $region35: #{cifar10_oracle_forward.1} parent=11 // pred_region
        _
      $region36: #{cifar10_oracle_forward.1} parent=11 // pred_fallthru
        _
    $region12: #{cifar10_oracle_forward.1} parent=5 // pred_fallthru
      _
    %p224 = scmp.lt.s32.totalorder %s13, 2
    // Predicated region
    $region37: #{cifar10_oracle_forward.1} parent=5 // pred_check
      %p225 = pneg %p224
    $region38: #{cifar10_oracle_forward.1} parent=5 // pred_check_branch
      %227 = sbr.rel (%p225) target = $region40
    $region39: #{cifar10_oracle_forward.1} parent=5 // pred_region
      // Predicated region
      $region41: #{cifar10_oracle_forward.1} parent=39 // pred_check
        %p228 = pneg %p33
      $region42: #{cifar10_oracle_forward.1} parent=39 // pred_check_branch
        %230 = sbr.rel (%p228) target = $region44
      $region43: #{cifar10_oracle_forward.1} parent=39 // pred_region
        %s231 = smul.u32 16, %s13
        %p232 = scmp.lt.s32.totalorder %s231, 31
        %s233 = scalar_select %p232, %s231, 31
        %s234 = smul.addr %s233, 8
        %s235 = scalar_lea.vmem %s0, %s234
        %s236 = smul.u32 16, %s13
      $region44: #{cifar10_oracle_forward.1} parent=39 // pred_fallthru
        _
    $region40: #{cifar10_oracle_forward.1} parent=5 // pred_fallthru
      _
    %p237 = scmp.le.s32.totalorder 1, %s13
    %p238 = scmp.lt.s32.totalorder %s13, 3
    %p239 = pnand %p237, %p238
    %p240 = pneg %p239
    // Predicated region
    $region45: #{cifar10_oracle_forward.1} parent=5 // pred_check
      _
    $region46: #{cifar10_oracle_forward.1} parent=5 // pred_check_branch
      %242 = sbr.rel (%p239) target = $region48
    $region47: #{cifar10_oracle_forward.1} parent=5 // pred_region
      %s243 = ssub.s32 %s13, 1
      %s244 = smul.u32 16, %s18
      %p245 = scmp.lt.s32.totalorder %s244, 31
      %s246 = scalar_select %p245, %s244, 31
      %s247 = smul.addr %s246, 8
      %s248 = scalar_lea.vmem %s0, %s247
      %p249 = pneg %p39
      %p250 = pneg %p36
      %p251 = pneg %p60
      %p252 = pneg %p57
      %p253 = pneg %p81
      %p254 = pneg %p78
      %p255 = pneg %p102
      %p256 = pneg %p99
      %p257 = pneg %p123
      %p258 = pneg %p120
      %p259 = pneg %p144
      %p260 = pneg %p141
      %p261 = pneg %p165
      %p262 = pneg %p162
      %p263 = pneg %p191
      %p264 = pneg %p188
      %s265 = smul.u32 16, %s18
      %p266 = scmp.lt.s32.totalorder %s265, 31
      %s267 = scalar_select %p266, %s265, 31
      %s268 = smul.addr %s267, 8
      %s269 = scalar_lea.vmem %s7, %s268
      %s270 = smul.u32 16, %s18
      %p271 = scmp.lt.s32.totalorder %s270, 31
      %s272 = scalar_select %p271, %s270, 31
      %s273 = smul.addr %s272, 8
      %s274 = scalar_lea.vmem %s0, %s273
      %s275 = smul.u32 16, %s18
      %s276 = smul.u32 16, %s18
      %p277 = scmp.lt.s32.totalorder %s276, 31
      %s278 = scalar_select %p277, %s276, 31
      %s279 = smul.addr %s278, 8
      %s280 = scalar_lea.vmem %s7, %s279
      %s281 = smul.u32 16, %s18
      %v283 = vld [vmem:[%s274] sm:$0xff]
      %v284 = vld [vmem:[%s274 + $0x8] sm:$0xff]
      %v285 = vld [vmem:[%s274 + $0x10] sm:$0xff]
      %v286 = vld [vmem:[%s274 + $0x18] sm:$0xff]
      %v287 = vld [vmem:[%s274 + $0x20] sm:$0xff]
      %v288 = vld [vmem:[%s274 + $0x28] sm:$0xff]
      %v289 = vld [vmem:[%s274 + $0x30] sm:$0xff]
      %v290 = vld [vmem:[%s274 + $0x38] sm:$0xff]
      %v291 = vld [vmem:[%s274 + $0x40] sm:$0xff]
      %v292 = vld [vmem:[%s274 + $0x48] sm:$0xff]
      %v293 = vld [vmem:[%s274 + $0x50] sm:$0xff]
      %v294 = vld [vmem:[%s274 + $0x58] sm:$0xff]
      %v295 = vld [vmem:[%s274 + $0x60] sm:$0xff]
      %v296 = vld [vmem:[%s274 + $0x68] sm:$0xff]
      %v297 = vld [vmem:[%s274 + $0x70] sm:$0xff]
      %v298 = vld [vmem:[%s274 + $0x78] sm:$0xff]
      %v299 = vpack.c.bf16 %v284, %v283
      %v300 = vpack.c.bf16 %v286, %v285
      %v301 = vpack.c.bf16 %v288, %v287
      %v302 = vpack.c.bf16 %v290, %v289
      %v303 = vpack.c.bf16 %v292, %v291
      %v304 = vpack.c.bf16 %v294, %v293
      %v305 = vpack.c.bf16 %v296, %v295
      %v306 = vpack.c.bf16 %v298, %v297
      %v307 = vld [vmem:[%s1] sm:$0xff]
      %v308 = vld [vmem:[%s1 + $0x8] sm:$0xff]
      %v309 = vld [vmem:[%s1 + $0x10] sm:$0xff]
      %v310 = vld [vmem:[%s1 + $0x18] sm:$0xff]
      %v311 = vld [vmem:[%s1 + $0x20] sm:$0xff]
      %v312 = vld [vmem:[%s1 + $0x28] sm:$0xff]
      %v313 = vld [vmem:[%s1 + $0x30] sm:$0xff]
      %v314 = vld [vmem:[%s1 + $0x38] sm:$0xff]
      %v315 = vld [vmem:[%s2] sm:$0xf]
      %v317 = vlaneseq
      %v318 = vshrl.u32 %v317, 7
      %v319 = vsub.s32 0, %v318
      %v320 = vrot.slane %v315, %v319
      %v321 = vlaneseq
      %v322 = vshrl.u32 %v321, 7
      %v323 = vsub.s32 1, %v322
      %v324 = vrot.slane %v315, %v323
      %v325 = vlaneseq
      %v326 = vshrl.u32 %v325, 7
      %v327 = vsub.s32 2, %v326
      %v328 = vrot.slane %v315, %v327
      %v329 = vlaneseq
      %v330 = vshrl.u32 %v329, 7
      %v331 = vsub.s32 3, %v330
      %v332 = vrot.slane %v315, %v331
      %v345 = vunpack.c.l.b16 %v307
      %v346 = vunpack.c.h.b16 %v307
      %v347 = vunpack.c.l.b16 %v308
      %v348 = vunpack.c.h.b16 %v308
      %v349 = vunpack.c.l.b16 %v309
      %v350 = vunpack.c.h.b16 %v309
      %v351 = vunpack.c.l.b16 %v310
      %v352 = vunpack.c.h.b16 %v310
      %v353 = vunpack.c.l.b16 %v311
      %v354 = vunpack.c.h.b16 %v311
      %v355 = vunpack.c.l.b16 %v312
      %v356 = vunpack.c.h.b16 %v312
      %v357 = vunpack.c.l.b16 %v313
      %v358 = vunpack.c.h.b16 %v313
      %v359 = vunpack.c.l.b16 %v314
      %v360 = vunpack.c.h.b16 %v314
      %v361 = vpack.c.b16 %v349, %v345
      %v362 = vpack.c.b16 %v350, %v346
      %v363 = vpack.c.b16 %v351, %v347
      %v364 = vpack.c.b16 %v352, %v348
      %v365 = vpack.c.b16 %v357, %v353
      %v366 = vpack.c.b16 %v358, %v354
      %v367 = vpack.c.b16 %v359, %v355
      %v368 = vpack.c.b16 %v360, %v356
      %vm377 = vcmask 261120
      %v379 = vsel %vm377, %v299, 0
      %v382 = vsel %vm377, %v300, 0
      %v385 = vsel %vm377, %v301, 0
      %v388 = vsel %vm377, %v302, 0
      %v391 = vsel %vm377, %v303, 0
      %v394 = vsel %vm377, %v304, 0
      %v397 = vsel %vm377, %v305, 0
      %v400 = vsel %vm377, %v306, 0
      %402 = vmatprep.subr.bf16.mxu0 %v362
      %403 = vmatpush1.bf16.msra.mxu0 %v361
      %404 = vmatprep.subr.bf16.mxu0 %v366
      %405 = vmatpush1.bf16.msra.mxu0 %v365
      %406 = vmatprep.subr.bf16.mxu0 0
      %407 = vmatpush1.bf16.msra.mxu0 0
      %408 = vmatprep.subr.bf16.mxu0 0
      %409 = vmatpush1.bf16.msra.mxu0 0
      %410 = vmatprep.subr.bf16.mxu0 0
      %411 = vmatpush1.bf16.msra.mxu0 0
      %412 = vmatprep.subr.bf16.mxu0 0
      %413 = vmatpush1.bf16.msra.mxu0 0
      %414 = vmatprep.subr.bf16.mxu0 0
      %415 = vmatpush1.bf16.msra.mxu0 0
      %416 = vmatprep.subr.bf16.mxu0 0
      %417 = vmatpush1.bf16.msra.mxu0 0
      %418 = vmatprep.subr.bf16.mxu0 0
      %419 = vmatpush1.bf16.msra.mxu0 0
      %420 = vmatprep.subr.bf16.mxu0 0
      %421 = vmatpush1.bf16.msra.mxu0 0
      %422 = vmatprep.subr.bf16.mxu0 0
      %423 = vmatpush1.bf16.msra.mxu0 0
      %424 = vmatprep.subr.bf16.mxu0 0
      %425 = vmatpush1.bf16.msra.mxu0 0
      %426 = vmatprep.subr.bf16.mxu0 0
      %427 = vmatpush1.bf16.msra.mxu0 0
      %428 = vmatprep.subr.bf16.mxu0 0
      %429 = vmatpush1.bf16.msra.mxu0 0
      %430 = vmatprep.subr.bf16.mxu0 0
      %431 = vmatpush1.bf16.msra.mxu0 0
      %432 = vmatprep.subr.bf16.mxu0 0
      %433 = vmatpush1.bf16.msra.mxu0 0
      %434 = vmatprep.mubr.bf16.mxu0 0
      %435 = vmatmul.mubr.bf16.gmra.mrb[0].mxu0 %v379
      %v436 = vpop.f32.mrb[0].mxu0
      %v437 = vadd.f32 %v320, %v436
      %v438 = vpop.f32.mrb[0].mxu0
      %v439 = vadd.f32 %v324, %v438
      %v440 = vpop.f32.mrb[0].mxu0
      %v441 = vadd.f32 %v320, %v440
      %v442 = vpop.f32.mrb[0].mxu0
      %v443 = vadd.f32 %v324, %v442
      %444 = vmatprep.mubr.bf16.mxu0 0
      %445 = vmatmul.mubr.bf16.gmra.mrb[0].mxu0 %v382
      %v446 = vpop.f32.mrb[0].mxu0
      %v447 = vadd.f32 %v320, %v446
      %v448 = vpop.f32.mrb[0].mxu0
      %v449 = vadd.f32 %v324, %v448
      %v450 = vpop.f32.mrb[0].mxu0
      %v451 = vadd.f32 %v320, %v450
      %v452 = vpop.f32.mrb[0].mxu0
      %v453 = vadd.f32 %v324, %v452
      %454 = vmatprep.mubr.bf16.mxu0 0
      %455 = vmatmul.mubr.bf16.gmra.mrb[0].mxu0 %v385
      %v456 = vpop.f32.mrb[0].mxu0
      %v457 = vadd.f32 %v320, %v456
      %v458 = vpop.f32.mrb[0].mxu0
      %v459 = vadd.f32 %v324, %v458
      %v460 = vpop.f32.mrb[0].mxu0
      %v461 = vadd.f32 %v320, %v460
      %v462 = vpop.f32.mrb[0].mxu0
      %v463 = vadd.f32 %v324, %v462
      %464 = vmatprep.mubr.bf16.mxu0 0
      %465 = vmatmul.mubr.bf16.gmra.mrb[0].mxu0 %v388
      %v466 = vpop.f32.mrb[0].mxu0
      %v467 = vadd.f32 %v320, %v466
      %v468 = vpop.f32.mrb[0].mxu0
      %v469 = vadd.f32 %v324, %v468
      %v470 = vpop.f32.mrb[0].mxu0
      %v471 = vadd.f32 %v320, %v470
      %v472 = vpop.f32.mrb[0].mxu0
      %v473 = vadd.f32 %v324, %v472
      %474 = vmatprep.mubr.bf16.mxu0 0
      %475 = vmatmul.mubr.bf16.gmra.mrb[0].mxu0 %v391
      %v476 = vpop.f32.mrb[0].mxu0
      %v477 = vadd.f32 %v320, %v476
      %v478 = vpop.f32.mrb[0].mxu0
      %v479 = vadd.f32 %v324, %v478
      %v480 = vpop.f32.mrb[0].mxu0
      %v481 = vadd.f32 %v320, %v480
      %v482 = vpop.f32.mrb[0].mxu0
      %v483 = vadd.f32 %v324, %v482
      %484 = vmatprep.mubr.bf16.mxu0 0
      %485 = vmatmul.mubr.bf16.gmra.mrb[0].mxu0 %v394
      %v486 = vpop.f32.mrb[0].mxu0
      %v487 = vadd.f32 %v320, %v486
      %v488 = vpop.f32.mrb[0].mxu0
      %v489 = vadd.f32 %v324, %v488
      %v490 = vpop.f32.mrb[0].mxu0
      %v491 = vadd.f32 %v320, %v490
      %v492 = vpop.f32.mrb[0].mxu0
      %v493 = vadd.f32 %v324, %v492
      %494 = vmatprep.mubr.bf16.mxu0 0
      %495 = vmatmul.mubr.bf16.gmra.mrb[0].mxu0 %v397
      %v496 = vpop.f32.mrb[0].mxu0
      %v497 = vadd.f32 %v320, %v496
      %v498 = vpop.f32.mrb[0].mxu0
      %v499 = vadd.f32 %v324, %v498
      %v500 = vpop.f32.mrb[0].mxu0
      %v501 = vadd.f32 %v320, %v500
      %v502 = vpop.f32.mrb[0].mxu0
      %v503 = vadd.f32 %v324, %v502
      %504 = vmatprep.mubr.bf16.mxu0 0
      %505 = vmatmul.mubr.bf16.gmra.mrb[0].mxu0 %v400
      %v506 = vpop.f32.mrb[0].mxu0
      %v507 = vadd.f32 %v320, %v506
      %v508 = vpop.f32.mrb[0].mxu0
      %v509 = vadd.f32 %v324, %v508
      %v510 = vpop.f32.mrb[0].mxu0
      %v511 = vadd.f32 %v320, %v510
      %v512 = vpop.f32.mrb[0].mxu0
      %v513 = vadd.f32 %v324, %v512
      %514 = vdwg.mxu0
      %515 = vmatprep.subr.bf16.mxu0 %v364
      %516 = vmatpush1.bf16.msra.mxu0 %v363
      %517 = vmatprep.subr.bf16.mxu0 %v368
      %518 = vmatpush1.bf16.msra.mxu0 %v367
      %519 = vmatprep.subr.bf16.mxu0 0
      %520 = vmatpush1.bf16.msra.mxu0 0
      %521 = vmatprep.subr.bf16.mxu0 0
      %522 = vmatpush1.bf16.msra.mxu0 0
      %523 = vmatprep.subr.bf16.mxu0 0
      %524 = vmatpush1.bf16.msra.mxu0 0
      %525 = vmatprep.subr.bf16.mxu0 0
      %526 = vmatpush1.bf16.msra.mxu0 0
      %527 = vmatprep.subr.bf16.mxu0 0
      %528 = vmatpush1.bf16.msra.mxu0 0
      %529 = vmatprep.subr.bf16.mxu0 0
      %530 = vmatpush1.bf16.msra.mxu0 0
      %531 = vmatprep.subr.bf16.mxu0 0
      %532 = vmatpush1.bf16.msra.mxu0 0
      %533 = vmatprep.subr.bf16.mxu0 0
      %534 = vmatpush1.bf16.msra.mxu0 0
      %535 = vmatprep.subr.bf16.mxu0 0
      %536 = vmatpush1.bf16.msra.mxu0 0
      %537 = vmatprep.subr.bf16.mxu0 0
      %538 = vmatpush1.bf16.msra.mxu0 0
      %539 = vmatprep.subr.bf16.mxu0 0
      %540 = vmatpush1.bf16.msra.mxu0 0
      %541 = vmatprep.subr.bf16.mxu0 0
      %542 = vmatpush1.bf16.msra.mxu0 0
      %543 = vmatprep.subr.bf16.mxu0 0
      %544 = vmatpush1.bf16.msra.mxu0 0
      %545 = vmatprep.subr.bf16.mxu0 0
      %546 = vmatpush1.bf16.msra.mxu0 0
      %547 = vmatprep.mubr.bf16.mxu0 0
      %548 = vmatmul.mubr.bf16.gmra.mrb[0].mxu0 %v379
      %v549 = vpop.f32.mrb[0].mxu0
      %v550 = vadd.f32 %v328, %v549
      %v551 = vpop.f32.mrb[0].mxu0
      %v552 = vadd.f32 %v332, %v551
      %v553 = vpop.f32.mrb[0].mxu0
      %v554 = vadd.f32 %v328, %v553
      %v555 = vpop.f32.mrb[0].mxu0
      %v556 = vadd.f32 %v332, %v555
      %557 = vmatprep.mubr.bf16.mxu0 0
      %558 = vmatmul.mubr.bf16.gmra.mrb[0].mxu0 %v382
      %v559 = vpop.f32.mrb[0].mxu0
      %v560 = vadd.f32 %v328, %v559
      %v561 = vpop.f32.mrb[0].mxu0
      %v562 = vadd.f32 %v332, %v561
      %v563 = vpop.f32.mrb[0].mxu0
      %v564 = vadd.f32 %v328, %v563
      %v565 = vpop.f32.mrb[0].mxu0
      %v566 = vadd.f32 %v332, %v565
      %567 = vmatprep.mubr.bf16.mxu0 0
      %568 = vmatmul.mubr.bf16.gmra.mrb[0].mxu0 %v385
      %v569 = vpop.f32.mrb[0].mxu0
      %v570 = vadd.f32 %v328, %v569
      %v571 = vpop.f32.mrb[0].mxu0
      %v572 = vadd.f32 %v332, %v571
      %v573 = vpop.f32.mrb[0].mxu0
      %v574 = vadd.f32 %v328, %v573
      %v575 = vpop.f32.mrb[0].mxu0
      %v576 = vadd.f32 %v332, %v575
      %577 = vmatprep.mubr.bf16.mxu0 0
      %578 = vmatmul.mubr.bf16.gmra.mrb[0].mxu0 %v388
      %v579 = vpop.f32.mrb[0].mxu0
      %v580 = vadd.f32 %v328, %v579
      %v581 = vpop.f32.mrb[0].mxu0
      %v582 = vadd.f32 %v332, %v581
      %v583 = vpop.f32.mrb[0].mxu0
      %v584 = vadd.f32 %v328, %v583
      %v585 = vpop.f32.mrb[0].mxu0
      %v586 = vadd.f32 %v332, %v585
      %587 = vmatprep.mubr.bf16.mxu0 0
      %588 = vmatmul.mubr.bf16.gmra.mrb[0].mxu0 %v391
      %v589 = vpop.f32.mrb[0].mxu0
      %v590 = vadd.f32 %v328, %v589
      %v591 = vpop.f32.mrb[0].mxu0
      %v592 = vadd.f32 %v332, %v591
      %v593 = vpop.f32.mrb[0].mxu0
      %v594 = vadd.f32 %v328, %v593
      %v595 = vpop.f32.mrb[0].mxu0
      %v596 = vadd.f32 %v332, %v595
      %597 = vmatprep.mubr.bf16.mxu0 0
      %598 = vmatmul.mubr.bf16.gmra.mrb[0].mxu0 %v394
      %v599 = vpop.f32.mrb[0].mxu0
      %v600 = vadd.f32 %v328, %v599
      %v601 = vpop.f32.mrb[0].mxu0
      %v602 = vadd.f32 %v332, %v601
      %v603 = vpop.f32.mrb[0].mxu0
      %v604 = vadd.f32 %v328, %v603
      %v605 = vpop.f32.mrb[0].mxu0
      %v606 = vadd.f32 %v332, %v605
      %607 = vmatprep.mubr.bf16.mxu0 0
      %608 = vmatmul.mubr.bf16.gmra.mrb[0].mxu0 %v397
      %v609 = vpop.f32.mrb[0].mxu0
      %v610 = vadd.f32 %v328, %v609
      %v611 = vpop.f32.mrb[0].mxu0
      %v612 = vadd.f32 %v332, %v611
      %v613 = vpop.f32.mrb[0].mxu0
      %v614 = vadd.f32 %v328, %v613
      %v615 = vpop.f32.mrb[0].mxu0
      %v616 = vadd.f32 %v332, %v615
      %617 = vmatprep.mubr.bf16.mxu0 0
      %618 = vmatmul.mubr.bf16.gmra.mrb[0].mxu0 %v400
      %v619 = vpop.f32.mrb[0].mxu0
      %v620 = vadd.f32 %v328, %v619
      %v621 = vpop.f32.mrb[0].mxu0
      %v622 = vadd.f32 %v332, %v621
      %v623 = vpop.f32.mrb[0].mxu0
      %v624 = vadd.f32 %v328, %v623
      %v625 = vpop.f32.mrb[0].mxu0
      %v626 = vadd.f32 %v332, %v625
      %627 = vdwg.mxu0
      %v628 = vmax.f32 %v437, 0.0
      %v629 = vmax.f32 %v439, 0.0
      %v630 = vmax.f32 %v550, 0.0
      %v631 = vmax.f32 %v552, 0.0
      %v632 = vmax.f32 %v441, 0.0
      %v633 = vmax.f32 %v443, 0.0
      %v634 = vmax.f32 %v554, 0.0
      %v635 = vmax.f32 %v556, 0.0
      %v636 = vmax.f32 %v447, 0.0
      %v637 = vmax.f32 %v449, 0.0
      %v638 = vmax.f32 %v560, 0.0
      %v639 = vmax.f32 %v562, 0.0
      %v640 = vmax.f32 %v451, 0.0
      %v641 = vmax.f32 %v453, 0.0
      %v642 = vmax.f32 %v564, 0.0
      %v643 = vmax.f32 %v566, 0.0
      %v644 = vmax.f32 %v457, 0.0
      %v645 = vmax.f32 %v459, 0.0
      %v646 = vmax.f32 %v570, 0.0
      %v647 = vmax.f32 %v572, 0.0
      %v648 = vmax.f32 %v461, 0.0
      %v649 = vmax.f32 %v463, 0.0
      %v650 = vmax.f32 %v574, 0.0
      %v651 = vmax.f32 %v576, 0.0
      %v652 = vmax.f32 %v467, 0.0
      %v653 = vmax.f32 %v469, 0.0
      %v654 = vmax.f32 %v580, 0.0
      %v655 = vmax.f32 %v582, 0.0
      %v656 = vmax.f32 %v471, 0.0
      %v657 = vmax.f32 %v473, 0.0
      %v658 = vmax.f32 %v584, 0.0
      %v659 = vmax.f32 %v586, 0.0
      %v660 = vmax.f32 %v477, 0.0
      %v661 = vmax.f32 %v479, 0.0
      %v662 = vmax.f32 %v590, 0.0
      %v663 = vmax.f32 %v592, 0.0
      %v664 = vmax.f32 %v481, 0.0
      %v665 = vmax.f32 %v483, 0.0
      %v666 = vmax.f32 %v594, 0.0
      %v667 = vmax.f32 %v596, 0.0
      %v668 = vmax.f32 %v487, 0.0
      %v669 = vmax.f32 %v489, 0.0
      %v670 = vmax.f32 %v600, 0.0
      %v671 = vmax.f32 %v602, 0.0
      %v672 = vmax.f32 %v491, 0.0
      %v673 = vmax.f32 %v493, 0.0
      %v674 = vmax.f32 %v604, 0.0
      %v675 = vmax.f32 %v606, 0.0
      %v676 = vmax.f32 %v497, 0.0
      %v677 = vmax.f32 %v499, 0.0
      %v678 = vmax.f32 %v610, 0.0
      %v679 = vmax.f32 %v612, 0.0
      %v680 = vmax.f32 %v501, 0.0
      %v681 = vmax.f32 %v503, 0.0
      %v682 = vmax.f32 %v614, 0.0
      %v683 = vmax.f32 %v616, 0.0
      %v684 = vmax.f32 %v507, 0.0
      %v685 = vmax.f32 %v509, 0.0
      %v686 = vmax.f32 %v620, 0.0
      %v687 = vmax.f32 %v622, 0.0
      %v688 = vmax.f32 %v511, 0.0
      %v689 = vmax.f32 %v513, 0.0
      %v690 = vmax.f32 %v624, 0.0
      %v691 = vmax.f32 %v626, 0.0
      %v692 = vpack.c.bf16 %v632, %v628
      %v693 = vpack.c.bf16 %v633, %v629
      %v694 = vpack.c.bf16 %v634, %v630
      %v695 = vpack.c.bf16 %v635, %v631
      %v696 = vpack.c.bf16 %v640, %v636
      %v697 = vpack.c.bf16 %v641, %v637
      %v698 = vpack.c.bf16 %v642, %v638
      %v699 = vpack.c.bf16 %v643, %v639
      %v700 = vpack.c.bf16 %v648, %v644
      %v701 = vpack.c.bf16 %v649, %v645
      %v702 = vpack.c.bf16 %v650, %v646
      %v703 = vpack.c.bf16 %v651, %v647
      %v704 = vpack.c.bf16 %v656, %v652
      %v705 = vpack.c.bf16 %v657, %v653
      %v706 = vpack.c.bf16 %v658, %v654
      %v707 = vpack.c.bf16 %v659, %v655
      %v708 = vpack.c.bf16 %v664, %v660
      %v709 = vpack.c.bf16 %v665, %v661
      %v710 = vpack.c.bf16 %v666, %v662
      %v711 = vpack.c.bf16 %v667, %v663
      %v712 = vpack.c.bf16 %v672, %v668
      %v713 = vpack.c.bf16 %v673, %v669
      %v714 = vpack.c.bf16 %v674, %v670
      %v715 = vpack.c.bf16 %v675, %v671
      %v716 = vpack.c.bf16 %v680, %v676
      %v717 = vpack.c.bf16 %v681, %v677
      %v718 = vpack.c.bf16 %v682, %v678
      %v719 = vpack.c.bf16 %v683, %v679
      %v720 = vpack.c.bf16 %v688, %v684
      %v721 = vpack.c.bf16 %v689, %v685
      %v722 = vpack.c.bf16 %v690, %v686
      %v723 = vpack.c.bf16 %v691, %v687
      %v724 = vld [vmem:[%s3] sm:$0xff]
      %v725 = vld [vmem:[%s3 + $0x8] sm:$0xff]
      %v726 = vld [vmem:[%s3 + $0x10] sm:$0xff]
      %v727 = vld [vmem:[%s3 + $0x18] sm:$0xff]
      %v728 = vld [vmem:[%s3 + $0x20] sm:$0xff]
      %v729 = vld [vmem:[%s3 + $0x28] sm:$0xff]
      %v730 = vld [vmem:[%s3 + $0x30] sm:$0xff]
      %v731 = vld [vmem:[%s3 + $0x38] sm:$0xff]
      %v732 = vld [vmem:[%s3 + $0x40] sm:$0xff]
      %v733 = vld [vmem:[%s3 + $0x48] sm:$0xff]
      %v734 = vld [vmem:[%s3 + $0x50] sm:$0xff]
      %v735 = vld [vmem:[%s3 + $0x58] sm:$0xff]
      %v736 = vld [vmem:[%s3 + $0x60] sm:$0xff]
      %v737 = vld [vmem:[%s3 + $0x68] sm:$0xff]
      %v738 = vld [vmem:[%s3 + $0x70] sm:$0xff]
      %v739 = vld [vmem:[%s3 + $0x78] sm:$0xff]
      %v740 = vld [vmem:[%s3 + $0x80] sm:$0xff]
      %v741 = vld [vmem:[%s3 + $0x88] sm:$0xff]
      %v742 = vld [vmem:[%s3 + $0x90] sm:$0xff]
      %v743 = vld [vmem:[%s3 + $0x98] sm:$0xff]
      %v744 = vld [vmem:[%s3 + $0xa0] sm:$0xff]
      %v745 = vld [vmem:[%s3 + $0xa8] sm:$0xff]
      %v746 = vld [vmem:[%s3 + $0xb0] sm:$0xff]
      %v747 = vld [vmem:[%s3 + $0xb8] sm:$0xff]
      %v748 = vld [vmem:[%s3 + $0xc0] sm:$0xff]
      %v749 = vld [vmem:[%s3 + $0xc8] sm:$0xff]
      %v750 = vld [vmem:[%s3 + $0xd0] sm:$0xff]
      %v751 = vld [vmem:[%s3 + $0xd8] sm:$0xff]
      %v752 = vld [vmem:[%s3 + $0xe0] sm:$0xff]
      %v753 = vld [vmem:[%s3 + $0xe8] sm:$0xff]
      %v754 = vld [vmem:[%s3 + $0xf0] sm:$0xff]
      %v755 = vld [vmem:[%s3 + $0xf8] sm:$0xff]
      %v756 = vld [vmem:[%s3 + $0x100] sm:$0xff]
      %v757 = vld [vmem:[%s3 + $0x108] sm:$0xff]
      %v758 = vld [vmem:[%s3 + $0x110] sm:$0xff]
      %v759 = vld [vmem:[%s3 + $0x118] sm:$0xff]
      %v760 = vld [vmem:[%s3 + $0x120] sm:$0xff]
      %v761 = vld [vmem:[%s3 + $0x128] sm:$0xff]
      %v762 = vld [vmem:[%s3 + $0x130] sm:$0xff]
      %v763 = vld [vmem:[%s3 + $0x138] sm:$0xff]
      %v764 = vld [vmem:[%s3 + $0x140] sm:$0xff]
      %v765 = vld [vmem:[%s3 + $0x148] sm:$0xff]
      %v766 = vld [vmem:[%s3 + $0x150] sm:$0xff]
      %v767 = vld [vmem:[%s3 + $0x158] sm:$0xff]
      %v768 = vld [vmem:[%s3 + $0x160] sm:$0xff]
      %v769 = vld [vmem:[%s3 + $0x168] sm:$0xff]
      %v770 = vld [vmem:[%s3 + $0x170] sm:$0xff]
      %v771 = vld [vmem:[%s3 + $0x178] sm:$0xff]
      %v772 = vld [vmem:[%s3 + $0x180] sm:$0xff]
      %v773 = vld [vmem:[%s3 + $0x188] sm:$0xff]
      %v774 = vld [vmem:[%s3 + $0x190] sm:$0xff]
      %v775 = vld [vmem:[%s3 + $0x198] sm:$0xff]
      %v776 = vld [vmem:[%s3 + $0x1a0] sm:$0xff]
      %v777 = vld [vmem:[%s3 + $0x1a8] sm:$0xff]
      %v778 = vld [vmem:[%s3 + $0x1b0] sm:$0xff]
      %v779 = vld [vmem:[%s3 + $0x1b8] sm:$0xff]
      %v780 = vld [vmem:[%s3 + $0x1c0] sm:$0xff]
      %v781 = vld [vmem:[%s3 + $0x1c8] sm:$0xff]
      %v782 = vld [vmem:[%s3 + $0x1d0] sm:$0xff]
      %v783 = vld [vmem:[%s3 + $0x1d8] sm:$0xff]
      %v784 = vld [vmem:[%s3 + $0x1e0] sm:$0xff]
      %v785 = vld [vmem:[%s3 + $0x1e8] sm:$0xff]
      %v786 = vld [vmem:[%s3 + $0x1f0] sm:$0xff]
      %v787 = vld [vmem:[%s3 + $0x1f8] sm:$0xff]
      %v788 = vld [vmem:[%s3 + $0x200] sm:$0xff]
      %v789 = vld [vmem:[%s3 + $0x208] sm:$0xff]
      %v790 = vld [vmem:[%s3 + $0x210] sm:$0xff]
      %v791 = vld [vmem:[%s3 + $0x218] sm:$0xff]
      %v792 = vld [vmem:[%s3 + $0x220] sm:$0xff]
      %v793 = vld [vmem:[%s3 + $0x228] sm:$0xff]
      %v794 = vld [vmem:[%s3 + $0x230] sm:$0xff]
      %v795 = vld [vmem:[%s3 + $0x238] sm:$0xff]
      %v796 = vld [vmem:[%s3 + $0x240] sm:$0xff]
      %v797 = vld [vmem:[%s3 + $0x248] sm:$0xff]
      %v798 = vld [vmem:[%s3 + $0x250] sm:$0xff]
      %v799 = vld [vmem:[%s3 + $0x258] sm:$0xff]
      %v800 = vld [vmem:[%s3 + $0x260] sm:$0xff]
      %v801 = vld [vmem:[%s3 + $0x268] sm:$0xff]
      %v802 = vld [vmem:[%s3 + $0x270] sm:$0xff]
      %v803 = vld [vmem:[%s3 + $0x278] sm:$0xff]
      %v804 = vld [vmem:[%s3 + $0x280] sm:$0xff]
      %v805 = vld [vmem:[%s3 + $0x288] sm:$0xff]
      %v806 = vld [vmem:[%s3 + $0x290] sm:$0xff]
      %v807 = vld [vmem:[%s3 + $0x298] sm:$0xff]
      %v808 = vld [vmem:[%s3 + $0x2a0] sm:$0xff]
      %v809 = vld [vmem:[%s3 + $0x2a8] sm:$0xff]
      %v810 = vld [vmem:[%s3 + $0x2b0] sm:$0xff]
      %v811 = vld [vmem:[%s3 + $0x2b8] sm:$0xff]
      %v812 = vld [vmem:[%s3 + $0x2c0] sm:$0xff]
      %v813 = vld [vmem:[%s3 + $0x2c8] sm:$0xff]
      %v814 = vld [vmem:[%s3 + $0x2d0] sm:$0xff]
      %v815 = vld [vmem:[%s3 + $0x2d8] sm:$0xff]
      %v816 = vld [vmem:[%s3 + $0x2e0] sm:$0xff]
      %v817 = vld [vmem:[%s3 + $0x2e8] sm:$0xff]
      %v818 = vld [vmem:[%s3 + $0x2f0] sm:$0xff]
      %v819 = vld [vmem:[%s3 + $0x2f8] sm:$0xff]
      %v820 = vld [vmem:[%s3 + $0x300] sm:$0xff]
      %v821 = vld [vmem:[%s3 + $0x308] sm:$0xff]
      %v822 = vld [vmem:[%s3 + $0x310] sm:$0xff]
      %v823 = vld [vmem:[%s3 + $0x318] sm:$0xff]
      %v824 = vld [vmem:[%s3 + $0x320] sm:$0xff]
      %v825 = vld [vmem:[%s3 + $0x328] sm:$0xff]
      %v826 = vld [vmem:[%s3 + $0x330] sm:$0xff]
      %v827 = vld [vmem:[%s3 + $0x338] sm:$0xff]
      %v828 = vld [vmem:[%s3 + $0x340] sm:$0xff]
      %v829 = vld [vmem:[%s3 + $0x348] sm:$0xff]
      %v830 = vld [vmem:[%s3 + $0x350] sm:$0xff]
      %v831 = vld [vmem:[%s3 + $0x358] sm:$0xff]
      %v832 = vld [vmem:[%s3 + $0x360] sm:$0xff]
      %v833 = vld [vmem:[%s3 + $0x368] sm:$0xff]
      %v834 = vld [vmem:[%s3 + $0x370] sm:$0xff]
      %v835 = vld [vmem:[%s3 + $0x378] sm:$0xff]
      %v836 = vld [vmem:[%s3 + $0x380] sm:$0xff]
      %v837 = vld [vmem:[%s3 + $0x388] sm:$0xff]
      %v838 = vld [vmem:[%s3 + $0x390] sm:$0xff]
      %v839 = vld [vmem:[%s3 + $0x398] sm:$0xff]
      %v840 = vld [vmem:[%s3 + $0x3a0] sm:$0xff]
      %v841 = vld [vmem:[%s3 + $0x3a8] sm:$0xff]
      %v842 = vld [vmem:[%s3 + $0x3b0] sm:$0xff]
      %v843 = vld [vmem:[%s3 + $0x3b8] sm:$0xff]
      %v844 = vld [vmem:[%s3 + $0x3c0] sm:$0xff]
      %v845 = vld [vmem:[%s3 + $0x3c8] sm:$0xff]
      %v846 = vld [vmem:[%s3 + $0x3d0] sm:$0xff]
      %v847 = vld [vmem:[%s3 + $0x3d8] sm:$0xff]
      %v848 = vld [vmem:[%s3 + $0x3e0] sm:$0xff]
      %v849 = vld [vmem:[%s3 + $0x3e8] sm:$0xff]
      %v850 = vld [vmem:[%s3 + $0x3f0] sm:$0xff]
      %v851 = vld [vmem:[%s3 + $0x3f8] sm:$0xff]
      %v852 = vld [vmem:[%s4] sm:$0xf]
      %v854 = vlaneseq
      %v855 = vshrl.u32 %v854, 7
      %v856 = vsub.s32 0, %v855
      %v857 = vrot.slane %v852, %v856
      %v858 = vlaneseq
      %v859 = vshrl.u32 %v858, 7
      %v860 = vsub.s32 1, %v859
      %v861 = vrot.slane %v852, %v860
      %v862 = vlaneseq
      %v863 = vshrl.u32 %v862, 7
      %v864 = vsub.s32 2, %v863
      %v865 = vrot.slane %v852, %v864
      %v866 = vlaneseq
      %v867 = vshrl.u32 %v866, 7
      %v868 = vsub.s32 3, %v867
      %v869 = vrot.slane %v852, %v868
      %v1002 = vunpack.c.l.b16 %v724
      %v1003 = vunpack.c.h.b16 %v724
      %v1004 = vunpack.c.l.b16 %v725
      %v1005 = vunpack.c.h.b16 %v725
      %v1006 = vunpack.c.l.b16 %v726
      %v1007 = vunpack.c.h.b16 %v726
      %v1008 = vunpack.c.l.b16 %v727
      %v1009 = vunpack.c.h.b16 %v727
      %v1010 = vunpack.c.l.b16 %v728
      %v1011 = vunpack.c.h.b16 %v728
      %v1012 = vunpack.c.l.b16 %v729
      %v1013 = vunpack.c.h.b16 %v729
      %v1014 = vunpack.c.l.b16 %v730
      %v1015 = vunpack.c.h.b16 %v730
      %v1016 = vunpack.c.l.b16 %v731
      %v1017 = vunpack.c.h.b16 %v731
      %v1018 = vunpack.c.l.b16 %v732
      %v1019 = vunpack.c.h.b16 %v732
      %v1020 = vunpack.c.l.b16 %v733
      %v1021 = vunpack.c.h.b16 %v733
      %v1022 = vunpack.c.l.b16 %v734
      %v1023 = vunpack.c.h.b16 %v734
      %v1024 = vunpack.c.l.b16 %v735
      %v1025 = vunpack.c.h.b16 %v735
      %v1026 = vunpack.c.l.b16 %v736
      %v1027 = vunpack.c.h.b16 %v736
      %v1028 = vunpack.c.l.b16 %v737
      %v1029 = vunpack.c.h.b16 %v737
      %v1030 = vunpack.c.l.b16 %v738
      %v1031 = vunpack.c.h.b16 %v738
      %v1032 = vunpack.c.l.b16 %v739
      %v1033 = vunpack.c.h.b16 %v739
      %v1034 = vunpack.c.l.b16 %v740
      %v1035 = vunpack.c.h.b16 %v740
      %v1036 = vunpack.c.l.b16 %v741
      %v1037 = vunpack.c.h.b16 %v741
      %v1038 = vunpack.c.l.b16 %v742
      %v1039 = vunpack.c.h.b16 %v742
      %v1040 = vunpack.c.l.b16 %v743
      %v1041 = vunpack.c.h.b16 %v743
      %v1042 = vunpack.c.l.b16 %v744
      %v1043 = vunpack.c.h.b16 %v744
      %v1044 = vunpack.c.l.b16 %v745
      %v1045 = vunpack.c.h.b16 %v745
      %v1046 = vunpack.c.l.b16 %v746
      %v1047 = vunpack.c.h.b16 %v746
      %v1048 = vunpack.c.l.b16 %v747
      %v1049 = vunpack.c.h.b16 %v747
      %v1050 = vunpack.c.l.b16 %v748
      %v1051 = vunpack.c.h.b16 %v748
      %v1052 = vunpack.c.l.b16 %v749
      %v1053 = vunpack.c.h.b16 %v749
      %v1054 = vunpack.c.l.b16 %v750
      %v1055 = vunpack.c.h.b16 %v750
      %v1056 = vunpack.c.l.b16 %v751
      %v1057 = vunpack.c.h.b16 %v751
      %v1058 = vunpack.c.l.b16 %v752
      %v1059 = vunpack.c.h.b16 %v752
      %v1060 = vunpack.c.l.b16 %v753
      %v1061 = vunpack.c.h.b16 %v753
      %v1062 = vunpack.c.l.b16 %v754
      %v1063 = vunpack.c.h.b16 %v754
      %v1064 = vunpack.c.l.b16 %v755
      %v1065 = vunpack.c.h.b16 %v755
      %v1066 = vunpack.c.l.b16 %v756
      %v1067 = vunpack.c.h.b16 %v756
      %v1068 = vunpack.c.l.b16 %v757
      %v1069 = vunpack.c.h.b16 %v757
      %v1070 = vunpack.c.l.b16 %v758
      %v1071 = vunpack.c.h.b16 %v758
      %v1072 = vunpack.c.l.b16 %v759
      %v1073 = vunpack.c.h.b16 %v759
      %v1074 = vunpack.c.l.b16 %v760
      %v1075 = vunpack.c.h.b16 %v760
      %v1076 = vunpack.c.l.b16 %v761
      %v1077 = vunpack.c.h.b16 %v761
      %v1078 = vunpack.c.l.b16 %v762
      %v1079 = vunpack.c.h.b16 %v762
      %v1080 = vunpack.c.l.b16 %v763
      %v1081 = vunpack.c.h.b16 %v763
      %v1082 = vunpack.c.l.b16 %v764
      %v1083 = vunpack.c.h.b16 %v764
      %v1084 = vunpack.c.l.b16 %v765
      %v1085 = vunpack.c.h.b16 %v765
      %v1086 = vunpack.c.l.b16 %v766
      %v1087 = vunpack.c.h.b16 %v766
      %v1088 = vunpack.c.l.b16 %v767
      %v1089 = vunpack.c.h.b16 %v767
      %v1090 = vunpack.c.l.b16 %v768
      %v1091 = vunpack.c.h.b16 %v768
      %v1092 = vunpack.c.l.b16 %v769
      %v1093 = vunpack.c.h.b16 %v769
      %v1094 = vunpack.c.l.b16 %v770
      %v1095 = vunpack.c.h.b16 %v770
      %v1096 = vunpack.c.l.b16 %v771
      %v1097 = vunpack.c.h.b16 %v771
      %v1098 = vunpack.c.l.b16 %v772
      %v1099 = vunpack.c.h.b16 %v772
      %v1100 = vunpack.c.l.b16 %v773
      %v1101 = vunpack.c.h.b16 %v773
      %v1102 = vunpack.c.l.b16 %v774
      %v1103 = vunpack.c.h.b16 %v774
      %v1104 = vunpack.c.l.b16 %v775
      %v1105 = vunpack.c.h.b16 %v775
      %v1106 = vunpack.c.l.b16 %v776
      %v1107 = vunpack.c.h.b16 %v776
      %v1108 = vunpack.c.l.b16 %v777
      %v1109 = vunpack.c.h.b16 %v777
      %v1110 = vunpack.c.l.b16 %v778
      %v1111 = vunpack.c.h.b16 %v778
      %v1112 = vunpack.c.l.b16 %v779
      %v1113 = vunpack.c.h.b16 %v779
      %v1114 = vunpack.c.l.b16 %v780
      %v1115 = vunpack.c.h.b16 %v780
      %v1116 = vunpack.c.l.b16 %v781
      %v1117 = vunpack.c.h.b16 %v781
      %v1118 = vunpack.c.l.b16 %v782
      %v1119 = vunpack.c.h.b16 %v782
      %v1120 = vunpack.c.l.b16 %v783
      %v1121 = vunpack.c.h.b16 %v783
      %v1122 = vunpack.c.l.b16 %v784
      %v1123 = vunpack.c.h.b16 %v784
      %v1124 = vunpack.c.l.b16 %v785
      %v1125 = vunpack.c.h.b16 %v785
      %v1126 = vunpack.c.l.b16 %v786
      %v1127 = vunpack.c.h.b16 %v786
      %v1128 = vunpack.c.l.b16 %v787
      %v1129 = vunpack.c.h.b16 %v787
      %v1130 = vunpack.c.l.b16 %v788
      %v1131 = vunpack.c.h.b16 %v788
      %v1132 = vunpack.c.l.b16 %v789
      %v1133 = vunpack.c.h.b16 %v789
      %v1134 = vunpack.c.l.b16 %v790
      %v1135 = vunpack.c.h.b16 %v790
      %v1136 = vunpack.c.l.b16 %v791
      %v1137 = vunpack.c.h.b16 %v791
      %v1138 = vunpack.c.l.b16 %v792
      %v1139 = vunpack.c.h.b16 %v792
      %v1140 = vunpack.c.l.b16 %v793
      %v1141 = vunpack.c.h.b16 %v793
      %v1142 = vunpack.c.l.b16 %v794
      %v1143 = vunpack.c.h.b16 %v794
      %v1144 = vunpack.c.l.b16 %v795
      %v1145 = vunpack.c.h.b16 %v795
      %v1146 = vunpack.c.l.b16 %v796
      %v1147 = vunpack.c.h.b16 %v796
      %v1148 = vunpack.c.l.b16 %v797
      %v1149 = vunpack.c.h.b16 %v797
      %v1150 = vunpack.c.l.b16 %v798
      %v1151 = vunpack.c.h.b16 %v798
      %v1152 = vunpack.c.l.b16 %v799
      %v1153 = vunpack.c.h.b16 %v799
      %v1154 = vunpack.c.l.b16 %v800
      %v1155 = vunpack.c.h.b16 %v800
      %v1156 = vunpack.c.l.b16 %v801
      %v1157 = vunpack.c.h.b16 %v801
      %v1158 = vunpack.c.l.b16 %v802
      %v1159 = vunpack.c.h.b16 %v802
      %v1160 = vunpack.c.l.b16 %v803
      %v1161 = vunpack.c.h.b16 %v803
      %v1162 = vunpack.c.l.b16 %v804
      %v1163 = vunpack.c.h.b16 %v804
      %v1164 = vunpack.c.l.b16 %v805
      %v1165 = vunpack.c.h.b16 %v805
      %v1166 = vunpack.c.l.b16 %v806
      %v1167 = vunpack.c.h.b16 %v806
      %v1168 = vunpack.c.l.b16 %v807
      %v1169 = vunpack.c.h.b16 %v807
      %v1170 = vunpack.c.l.b16 %v808
      %v1171 = vunpack.c.h.b16 %v808
      %v1172 = vunpack.c.l.b16 %v809
      %v1173 = vunpack.c.h.b16 %v809
      %v1174 = vunpack.c.l.b16 %v810
      %v1175 = vunpack.c.h.b16 %v810
      %v1176 = vunpack.c.l.b16 %v811
      %v1177 = vunpack.c.h.b16 %v811
      %v1178 = vunpack.c.l.b16 %v812
      %v1179 = vunpack.c.h.b16 %v812
      %v1180 = vunpack.c.l.b16 %v813
      %v1181 = vunpack.c.h.b16 %v813
      %v1182 = vunpack.c.l.b16 %v814
      %v1183 = vunpack.c.h.b16 %v814
      %v1184 = vunpack.c.l.b16 %v815
      %v1185 = vunpack.c.h.b16 %v815
      %v1186 = vunpack.c.l.b16 %v816
      %v1187 = vunpack.c.h.b16 %v816
      %v1188 = vunpack.c.l.b16 %v817
      %v1189 = vunpack.c.h.b16 %v817
      %v1190 = vunpack.c.l.b16 %v818
      %v1191 = vunpack.c.h.b16 %v818
      %v1192 = vunpack.c.l.b16 %v819
      %v1193 = vunpack.c.h.b16 %v819
      %v1194 = vunpack.c.l.b16 %v820
      %v1195 = vunpack.c.h.b16 %v820
      %v1196 = vunpack.c.l.b16 %v821
      %v1197 = vunpack.c.h.b16 %v821
      %v1198 = vunpack.c.l.b16 %v822
      %v1199 = vunpack.c.h.b16 %v822
      %v1200 = vunpack.c.l.b16 %v823
      %v1201 = vunpack.c.h.b16 %v823
      %v1202 = vunpack.c.l.b16 %v824
      %v1203 = vunpack.c.h.b16 %v824
      %v1204 = vunpack.c.l.b16 %v825
      %v1205 = vunpack.c.h.b16 %v825
      %v1206 = vunpack.c.l.b16 %v826
      %v1207 = vunpack.c.h.b16 %v826
      %v1208 = vunpack.c.l.b16 %v827
      %v1209 = vunpack.c.h.b16 %v827
      %v1210 = vunpack.c.l.b16 %v828
      %v1211 = vunpack.c.h.b16 %v828
      %v1212 = vunpack.c.l.b16 %v829
      %v1213 = vunpack.c.h.b16 %v829
      %v1214 = vunpack.c.l.b16 %v830
      %v1215 = vunpack.c.h.b16 %v830
      %v1216 = vunpack.c.l.b16 %v831
      %v1217 = vunpack.c.h.b16 %v831
      %v1218 = vunpack.c.l.b16 %v832
      %v1219 = vunpack.c.h.b16 %v832
      %v1220 = vunpack.c.l.b16 %v833
      %v1221 = vunpack.c.h.b16 %v833
      %v1222 = vunpack.c.l.b16 %v834
      %v1223 = vunpack.c.h.b16 %v834
      %v1224 = vunpack.c.l.b16 %v835
      %v1225 = vunpack.c.h.b16 %v835
      %v1226 = vunpack.c.l.b16 %v836
      %v1227 = vunpack.c.h.b16 %v836
      %v1228 = vunpack.c.l.b16 %v837
      %v1229 = vunpack.c.h.b16 %v837
      %v1230 = vunpack.c.l.b16 %v838
      %v1231 = vunpack.c.h.b16 %v838
      %v1232 = vunpack.c.l.b16 %v839
      %v1233 = vunpack.c.h.b16 %v839
      %v1234 = vunpack.c.l.b16 %v840
      %v1235 = vunpack.c.h.b16 %v840
      %v1236 = vunpack.c.l.b16 %v841
      %v1237 = vunpack.c.h.b16 %v841
      %v1238 = vunpack.c.l.b16 %v842
      %v1239 = vunpack.c.h.b16 %v842
      %v1240 = vunpack.c.l.b16 %v843
      %v1241 = vunpack.c.h.b16 %v843
      %v1242 = vunpack.c.l.b16 %v844
      %v1243 = vunpack.c.h.b16 %v844
      %v1244 = vunpack.c.l.b16 %v845
      %v1245 = vunpack.c.h.b16 %v845
      %v1246 = vunpack.c.l.b16 %v846
      %v1247 = vunpack.c.h.b16 %v846
      %v1248 = vunpack.c.l.b16 %v847
      %v1249 = vunpack.c.h.b16 %v847
      %v1250 = vunpack.c.l.b16 %v848
      %v1251 = vunpack.c.h.b16 %v848
      %v1252 = vunpack.c.l.b16 %v849
      %v1253 = vunpack.c.h.b16 %v849
      %v1254 = vunpack.c.l.b16 %v850
      %v1255 = vunpack.c.h.b16 %v850
      %v1256 = vunpack.c.l.b16 %v851
      %v1257 = vunpack.c.h.b16 %v851
      %v1258 = vpack.c.b16 %v1006, %v1002
      %v1259 = vpack.c.b16 %v1007, %v1003
      %v1260 = vpack.c.b16 %v1008, %v1004
      %v1261 = vpack.c.b16 %v1009, %v1005
      %v1262 = vpack.c.b16 %v1014, %v1010
      %v1263 = vpack.c.b16 %v1015, %v1011
      %v1264 = vpack.c.b16 %v1016, %v1012
      %v1265 = vpack.c.b16 %v1017, %v1013
      %v1266 = vpack.c.b16 %v1022, %v1018
      %v1267 = vpack.c.b16 %v1023, %v1019
      %v1268 = vpack.c.b16 %v1024, %v1020
      %v1269 = vpack.c.b16 %v1025, %v1021
      %v1270 = vpack.c.b16 %v1030, %v1026
      %v1271 = vpack.c.b16 %v1031, %v1027
      %v1272 = vpack.c.b16 %v1032, %v1028
      %v1273 = vpack.c.b16 %v1033, %v1029
      %v1274 = vpack.c.b16 %v1038, %v1034
      %v1275 = vpack.c.b16 %v1039, %v1035
      %v1276 = vpack.c.b16 %v1040, %v1036
      %v1277 = vpack.c.b16 %v1041, %v1037
      %v1278 = vpack.c.b16 %v1046, %v1042
      %v1279 = vpack.c.b16 %v1047, %v1043
      %v1280 = vpack.c.b16 %v1048, %v1044
      %v1281 = vpack.c.b16 %v1049, %v1045
      %v1282 = vpack.c.b16 %v1054, %v1050
      %v1283 = vpack.c.b16 %v1055, %v1051
      %v1284 = vpack.c.b16 %v1056, %v1052
      %v1285 = vpack.c.b16 %v1057, %v1053
      %v1286 = vpack.c.b16 %v1062, %v1058
      %v1287 = vpack.c.b16 %v1063, %v1059
      %v1288 = vpack.c.b16 %v1064, %v1060
      %v1289 = vpack.c.b16 %v1065, %v1061
      %v1290 = vpack.c.b16 %v1070, %v1066
      %v1291 = vpack.c.b16 %v1071, %v1067
      %v1292 = vpack.c.b16 %v1072, %v1068
      %v1293 = vpack.c.b16 %v1073, %v1069
      %v1294 = vpack.c.b16 %v1078, %v1074
      %v1295 = vpack.c.b16 %v1079, %v1075
      %v1296 = vpack.c.b16 %v1080, %v1076
      %v1297 = vpack.c.b16 %v1081, %v1077
      %v1298 = vpack.c.b16 %v1086, %v1082
      %v1299 = vpack.c.b16 %v1087, %v1083
      %v1300 = vpack.c.b16 %v1088, %v1084
      %v1301 = vpack.c.b16 %v1089, %v1085
      %v1302 = vpack.c.b16 %v1094, %v1090
      %v1303 = vpack.c.b16 %v1095, %v1091
      %v1304 = vpack.c.b16 %v1096, %v1092
      %v1305 = vpack.c.b16 %v1097, %v1093
      %v1306 = vpack.c.b16 %v1102, %v1098
      %v1307 = vpack.c.b16 %v1103, %v1099
      %v1308 = vpack.c.b16 %v1104, %v1100
      %v1309 = vpack.c.b16 %v1105, %v1101
      %v1310 = vpack.c.b16 %v1110, %v1106
      %v1311 = vpack.c.b16 %v1111, %v1107
      %v1312 = vpack.c.b16 %v1112, %v1108
      %v1313 = vpack.c.b16 %v1113, %v1109
      %v1314 = vpack.c.b16 %v1118, %v1114
      %v1315 = vpack.c.b16 %v1119, %v1115
      %v1316 = vpack.c.b16 %v1120, %v1116
      %v1317 = vpack.c.b16 %v1121, %v1117
      %v1318 = vpack.c.b16 %v1126, %v1122
      %v1319 = vpack.c.b16 %v1127, %v1123
      %v1320 = vpack.c.b16 %v1128, %v1124
      %v1321 = vpack.c.b16 %v1129, %v1125
      %v1322 = vpack.c.b16 %v1134, %v1130
      %v1323 = vpack.c.b16 %v1135, %v1131
      %v1324 = vpack.c.b16 %v1136, %v1132
      %v1325 = vpack.c.b16 %v1137, %v1133
      %v1326 = vpack.c.b16 %v1142, %v1138
      %v1327 = vpack.c.b16 %v1143, %v1139
      %v1328 = vpack.c.b16 %v1144, %v1140
      %v1329 = vpack.c.b16 %v1145, %v1141
      %v1330 = vpack.c.b16 %v1150, %v1146
      %v1331 = vpack.c.b16 %v1151, %v1147
      %v1332 = vpack.c.b16 %v1152, %v1148
      %v1333 = vpack.c.b16 %v1153, %v1149
      %v1334 = vpack.c.b16 %v1158, %v1154
      %v1335 = vpack.c.b16 %v1159, %v1155
      %v1336 = vpack.c.b16 %v1160, %v1156
      %v1337 = vpack.c.b16 %v1161, %v1157
      %v1338 = vpack.c.b16 %v1166, %v1162
      %v1339 = vpack.c.b16 %v1167, %v1163
      %v1340 = vpack.c.b16 %v1168, %v1164
      %v1341 = vpack.c.b16 %v1169, %v1165
      %v1342 = vpack.c.b16 %v1174, %v1170
      %v1343 = vpack.c.b16 %v1175, %v1171
      %v1344 = vpack.c.b16 %v1176, %v1172
      %v1345 = vpack.c.b16 %v1177, %v1173
      %v1346 = vpack.c.b16 %v1182, %v1178
      %v1347 = vpack.c.b16 %v1183, %v1179
      %v1348 = vpack.c.b16 %v1184, %v1180
      %v1349 = vpack.c.b16 %v1185, %v1181
      %v1350 = vpack.c.b16 %v1190, %v1186
      %v1351 = vpack.c.b16 %v1191, %v1187
      %v1352 = vpack.c.b16 %v1192, %v1188
      %v1353 = vpack.c.b16 %v1193, %v1189
      %v1354 = vpack.c.b16 %v1198, %v1194
      %v1355 = vpack.c.b16 %v1199, %v1195
      %v1356 = vpack.c.b16 %v1200, %v1196
      %v1357 = vpack.c.b16 %v1201, %v1197
      %v1358 = vpack.c.b16 %v1206, %v1202
      %v1359 = vpack.c.b16 %v1207, %v1203
      %v1360 = vpack.c.b16 %v1208, %v1204
      %v1361 = vpack.c.b16 %v1209, %v1205
      %v1362 = vpack.c.b16 %v1214, %v1210
      %v1363 = vpack.c.b16 %v1215, %v1211
      %v1364 = vpack.c.b16 %v1216, %v1212
      %v1365 = vpack.c.b16 %v1217, %v1213
      %v1366 = vpack.c.b16 %v1222, %v1218
      %v1367 = vpack.c.b16 %v1223, %v1219
      %v1368 = vpack.c.b16 %v1224, %v1220
      %v1369 = vpack.c.b16 %v1225, %v1221
      %v1370 = vpack.c.b16 %v1230, %v1226
      %v1371 = vpack.c.b16 %v1231, %v1227
      %v1372 = vpack.c.b16 %v1232, %v1228
      %v1373 = vpack.c.b16 %v1233, %v1229
      %v1374 = vpack.c.b16 %v1238, %v1234
      %v1375 = vpack.c.b16 %v1239, %v1235
      %v1376 = vpack.c.b16 %v1240, %v1236
      %v1377 = vpack.c.b16 %v1241, %v1237
      %v1378 = vpack.c.b16 %v1246, %v1242
      %v1379 = vpack.c.b16 %v1247, %v1243
      %v1380 = vpack.c.b16 %v1248, %v1244
      %v1381 = vpack.c.b16 %v1249, %v1245
      %v1382 = vpack.c.b16 %v1254, %v1250
      %v1383 = vpack.c.b16 %v1255, %v1251
      %v1384 = vpack.c.b16 %v1256, %v1252
      %v1385 = vpack.c.b16 %v1257, %v1253
      %1514 = vmatprep.subr.bf16.mxu0 %v1259
      %1515 = vmatpush1.bf16.msra.mxu0 %v1258
      %1516 = vmatprep.subr.bf16.mxu0 %v1263
      %1517 = vmatpush1.bf16.msra.mxu0 %v1262
      %1518 = vmatprep.subr.bf16.mxu0 %v1267
      %1519 = vmatpush1.bf16.msra.mxu0 %v1266
      %1520 = vmatprep.subr.bf16.mxu0 %v1271
      %1521 = vmatpush1.bf16.msra.mxu0 %v1270
      %1522 = vmatprep.subr.bf16.mxu0 %v1275
      %1523 = vmatpush1.bf16.msra.mxu0 %v1274
      %1524 = vmatprep.subr.bf16.mxu0 %v1279
      %1525 = vmatpush1.bf16.msra.mxu0 %v1278
      %1526 = vmatprep.subr.bf16.mxu0 %v1283
      %1527 = vmatpush1.bf16.msra.mxu0 %v1282
      %1528 = vmatprep.subr.bf16.mxu0 %v1287
      %1529 = vmatpush1.bf16.msra.mxu0 %v1286
      %1530 = vmatprep.subr.bf16.mxu0 %v1291
      %1531 = vmatpush1.bf16.msra.mxu0 %v1290
      %1532 = vmatprep.subr.bf16.mxu0 %v1295
      %1533 = vmatpush1.bf16.msra.mxu0 %v1294
      %1534 = vmatprep.subr.bf16.mxu0 %v1299
      %1535 = vmatpush1.bf16.msra.mxu0 %v1298
      %1536 = vmatprep.subr.bf16.mxu0 %v1303
      %1537 = vmatpush1.bf16.msra.mxu0 %v1302
      %1538 = vmatprep.subr.bf16.mxu0 %v1307
      %1539 = vmatpush1.bf16.msra.mxu0 %v1306
      %1540 = vmatprep.subr.bf16.mxu0 %v1311
      %1541 = vmatpush1.bf16.msra.mxu0 %v1310
      %1542 = vmatprep.subr.bf16.mxu0 %v1315
      %1543 = vmatpush1.bf16.msra.mxu0 %v1314
      %1544 = vmatprep.subr.bf16.mxu0 %v1319
      %1545 = vmatpush1.bf16.msra.mxu0 %v1318
      %1546 = vmatprep.mubr.bf16.mxu0 %v693
      %1547 = vmatmul.mubr.bf16.gmra.mrb[0].mxu0 %v692
      %v1548 = vpop.f32.mrb[0].mxu0
      %v1549 = vadd.f32 %v857, %v1548
      %v1550 = vpop.f32.mrb[0].mxu0
      %v1551 = vadd.f32 %v861, %v1550
      %v1552 = vpop.f32.mrb[0].mxu0
      %v1553 = vadd.f32 %v857, %v1552
      %v1554 = vpop.f32.mrb[0].mxu0
      %v1555 = vadd.f32 %v861, %v1554
      %1556 = vmatprep.mubr.bf16.mxu0 %v697
      %1557 = vmatmul.mubr.bf16.gmra.mrb[0].mxu0 %v696
      %v1558 = vpop.f32.mrb[0].mxu0
      %v1559 = vadd.f32 %v857, %v1558
      %v1560 = vpop.f32.mrb[0].mxu0
      %v1561 = vadd.f32 %v861, %v1560
      %v1562 = vpop.f32.mrb[0].mxu0
      %v1563 = vadd.f32 %v857, %v1562
      %v1564 = vpop.f32.mrb[0].mxu0
      %v1565 = vadd.f32 %v861, %v1564
      %1566 = vmatprep.mubr.bf16.mxu0 %v701
      %1567 = vmatmul.mubr.bf16.gmra.mrb[0].mxu0 %v700
      %v1568 = vpop.f32.mrb[0].mxu0
      %v1569 = vadd.f32 %v857, %v1568
      %v1570 = vpop.f32.mrb[0].mxu0
      %v1571 = vadd.f32 %v861, %v1570
      %v1572 = vpop.f32.mrb[0].mxu0
      %v1573 = vadd.f32 %v857, %v1572
      %v1574 = vpop.f32.mrb[0].mxu0
      %v1575 = vadd.f32 %v861, %v1574
      %1576 = vmatprep.mubr.bf16.mxu0 %v705
      %1577 = vmatmul.mubr.bf16.gmra.mrb[0].mxu0 %v704
      %v1578 = vpop.f32.mrb[0].mxu0
      %v1579 = vadd.f32 %v857, %v1578
      %v1580 = vpop.f32.mrb[0].mxu0
      %v1581 = vadd.f32 %v861, %v1580
      %v1582 = vpop.f32.mrb[0].mxu0
      %v1583 = vadd.f32 %v857, %v1582
      %v1584 = vpop.f32.mrb[0].mxu0
      %v1585 = vadd.f32 %v861, %v1584
      %1586 = vmatprep.mubr.bf16.mxu0 %v709
      %1587 = vmatmul.mubr.bf16.gmra.mrb[0].mxu0 %v708
      %v1588 = vpop.f32.mrb[0].mxu0
      %v1589 = vadd.f32 %v857, %v1588
      %v1590 = vpop.f32.mrb[0].mxu0
      %v1591 = vadd.f32 %v861, %v1590
      %v1592 = vpop.f32.mrb[0].mxu0
      %v1593 = vadd.f32 %v857, %v1592
      %v1594 = vpop.f32.mrb[0].mxu0
      %v1595 = vadd.f32 %v861, %v1594
      %1596 = vmatprep.mubr.bf16.mxu0 %v713
      %1597 = vmatmul.mubr.bf16.gmra.mrb[0].mxu0 %v712
      %v1598 = vpop.f32.mrb[0].mxu0
      %v1599 = vadd.f32 %v857, %v1598
      %v1600 = vpop.f32.mrb[0].mxu0
      %v1601 = vadd.f32 %v861, %v1600
      %v1602 = vpop.f32.mrb[0].mxu0
      %v1603 = vadd.f32 %v857, %v1602
      %v1604 = vpop.f32.mrb[0].mxu0
      %v1605 = vadd.f32 %v861, %v1604
      %1606 = vmatprep.mubr.bf16.mxu0 %v717
      %1607 = vmatmul.mubr.bf16.gmra.mrb[0].mxu0 %v716
      %v1608 = vpop.f32.mrb[0].mxu0
      %v1609 = vadd.f32 %v857, %v1608
      %v1610 = vpop.f32.mrb[0].mxu0
      %v1611 = vadd.f32 %v861, %v1610
      %v1612 = vpop.f32.mrb[0].mxu0
      %v1613 = vadd.f32 %v857, %v1612
      %v1614 = vpop.f32.mrb[0].mxu0
      %v1615 = vadd.f32 %v861, %v1614
      %1616 = vmatprep.mubr.bf16.mxu0 %v721
      %1617 = vmatmul.mubr.bf16.gmra.mrb[0].mxu0 %v720
      %v1618 = vpop.f32.mrb[0].mxu0
      %v1619 = vadd.f32 %v857, %v1618
      %v1620 = vpop.f32.mrb[0].mxu0
      %v1621 = vadd.f32 %v861, %v1620
      %v1622 = vpop.f32.mrb[0].mxu0
      %v1623 = vadd.f32 %v857, %v1622
      %v1624 = vpop.f32.mrb[0].mxu0
      %v1625 = vadd.f32 %v861, %v1624
      %1626 = vdwg.mxu0
      %1627 = vmatprep.subr.bf16.mxu0 %v1323
      %1628 = vmatpush1.bf16.msra.mxu0 %v1322
      %1629 = vmatprep.subr.bf16.mxu0 %v1327
      %1630 = vmatpush1.bf16.msra.mxu0 %v1326
      %1631 = vmatprep.subr.bf16.mxu0 %v1331
      %1632 = vmatpush1.bf16.msra.mxu0 %v1330
      %1633 = vmatprep.subr.bf16.mxu0 %v1335
      %1634 = vmatpush1.bf16.msra.mxu0 %v1334
      %1635 = vmatprep.subr.bf16.mxu0 %v1339
      %1636 = vmatpush1.bf16.msra.mxu0 %v1338
      %1637 = vmatprep.subr.bf16.mxu0 %v1343
      %1638 = vmatpush1.bf16.msra.mxu0 %v1342
      %1639 = vmatprep.subr.bf16.mxu0 %v1347
      %1640 = vmatpush1.bf16.msra.mxu0 %v1346
      %1641 = vmatprep.subr.bf16.mxu0 %v1351
      %1642 = vmatpush1.bf16.msra.mxu0 %v1350
      %1643 = vmatprep.subr.bf16.mxu0 %v1355
      %1644 = vmatpush1.bf16.msra.mxu0 %v1354
      %1645 = vmatprep.subr.bf16.mxu0 %v1359
      %1646 = vmatpush1.bf16.msra.mxu0 %v1358
      %1647 = vmatprep.subr.bf16.mxu0 %v1363
      %1648 = vmatpush1.bf16.msra.mxu0 %v1362
      %1649 = vmatprep.subr.bf16.mxu0 %v1367
      %1650 = vmatpush1.bf16.msra.mxu0 %v1366
      %1651 = vmatprep.subr.bf16.mxu0 %v1371
      %1652 = vmatpush1.bf16.msra.mxu0 %v1370
      %1653 = vmatprep.subr.bf16.mxu0 %v1375
      %1654 = vmatpush1.bf16.msra.mxu0 %v1374
      %1655 = vmatprep.subr.bf16.mxu0 %v1379
      %1656 = vmatpush1.bf16.msra.mxu0 %v1378
      %1657 = vmatprep.subr.bf16.mxu0 %v1383
      %1658 = vmatpush1.bf16.msra.mxu0 %v1382
      %1659 = vmatprep.mubr.bf16.mxu0 %v695
      %1660 = vmatmul.mubr.bf16.gmra.mrb[0].mxu0 %v694
      %v1661 = vpop.f32.mrb[0].mxu0
      %v1662 = vadd.f32 %v1549, %v1661
      %v1663 = vpop.f32.mrb[0].mxu0
      %v1664 = vadd.f32 %v1551, %v1663
      %v1665 = vpop.f32.mrb[0].mxu0
      %v1666 = vadd.f32 %v1553, %v1665
      %v1667 = vpop.f32.mrb[0].mxu0
      %v1668 = vadd.f32 %v1555, %v1667
      %1669 = vmatprep.mubr.bf16.mxu0 %v699
      %1670 = vmatmul.mubr.bf16.gmra.mrb[0].mxu0 %v698
      %v1671 = vpop.f32.mrb[0].mxu0
      %v1672 = vadd.f32 %v1559, %v1671
      %v1673 = vpop.f32.mrb[0].mxu0
      %v1674 = vadd.f32 %v1561, %v1673
      %v1675 = vpop.f32.mrb[0].mxu0
      %v1676 = vadd.f32 %v1563, %v1675
      %v1677 = vpop.f32.mrb[0].mxu0
      %v1678 = vadd.f32 %v1565, %v1677
      %1679 = vmatprep.mubr.bf16.mxu0 %v703
      %1680 = vmatmul.mubr.bf16.gmra.mrb[0].mxu0 %v702
      %v1681 = vpop.f32.mrb[0].mxu0
      %v1682 = vadd.f32 %v1569, %v1681
      %v1683 = vpop.f32.mrb[0].mxu0
      %v1684 = vadd.f32 %v1571, %v1683
      %v1685 = vpop.f32.mrb[0].mxu0
      %v1686 = vadd.f32 %v1573, %v1685
      %v1687 = vpop.f32.mrb[0].mxu0
      %v1688 = vadd.f32 %v1575, %v1687
      %1689 = vmatprep.mubr.bf16.mxu0 %v707
      %1690 = vmatmul.mubr.bf16.gmra.mrb[0].mxu0 %v706
      %v1691 = vpop.f32.mrb[0].mxu0
      %v1692 = vadd.f32 %v1579, %v1691
      %v1693 = vpop.f32.mrb[0].mxu0
      %v1694 = vadd.f32 %v1581, %v1693
      %v1695 = vpop.f32.mrb[0].mxu0
      %v1696 = vadd.f32 %v1583, %v1695
      %v1697 = vpop.f32.mrb[0].mxu0
      %v1698 = vadd.f32 %v1585, %v1697
      %1699 = vmatprep.mubr.bf16.mxu0 %v711
      %1700 = vmatmul.mubr.bf16.gmra.mrb[0].mxu0 %v710
      %v1701 = vpop.f32.mrb[0].mxu0
      %v1702 = vadd.f32 %v1589, %v1701
      %v1703 = vpop.f32.mrb[0].mxu0
      %v1704 = vadd.f32 %v1591, %v1703
      %v1705 = vpop.f32.mrb[0].mxu0
      %v1706 = vadd.f32 %v1593, %v1705
      %v1707 = vpop.f32.mrb[0].mxu0
      %v1708 = vadd.f32 %v1595, %v1707
      %1709 = vmatprep.mubr.bf16.mxu0 %v715
      %1710 = vmatmul.mubr.bf16.gmra.mrb[0].mxu0 %v714
      %v1711 = vpop.f32.mrb[0].mxu0
      %v1712 = vadd.f32 %v1599, %v1711
      %v1713 = vpop.f32.mrb[0].mxu0
      %v1714 = vadd.f32 %v1601, %v1713
      %v1715 = vpop.f32.mrb[0].mxu0
      %v1716 = vadd.f32 %v1603, %v1715
      %v1717 = vpop.f32.mrb[0].mxu0
      %v1718 = vadd.f32 %v1605, %v1717
      %1719 = vmatprep.mubr.bf16.mxu0 %v719
      %1720 = vmatmul.mubr.bf16.gmra.mrb[0].mxu0 %v718
      %v1721 = vpop.f32.mrb[0].mxu0
      %v1722 = vadd.f32 %v1609, %v1721
      %v1723 = vpop.f32.mrb[0].mxu0
      %v1724 = vadd.f32 %v1611, %v1723
      %v1725 = vpop.f32.mrb[0].mxu0
      %v1726 = vadd.f32 %v1613, %v1725
      %v1727 = vpop.f32.mrb[0].mxu0
      %v1728 = vadd.f32 %v1615, %v1727
      %1729 = vmatprep.mubr.bf16.mxu0 %v723
      %1730 = vmatmul.mubr.bf16.gmra.mrb[0].mxu0 %v722
      %v1731 = vpop.f32.mrb[0].mxu0
      %v1732 = vadd.f32 %v1619, %v1731
      %v1733 = vpop.f32.mrb[0].mxu0
      %v1734 = vadd.f32 %v1621, %v1733
      %v1735 = vpop.f32.mrb[0].mxu0
      %v1736 = vadd.f32 %v1623, %v1735
      %v1737 = vpop.f32.mrb[0].mxu0
      %v1738 = vadd.f32 %v1625, %v1737
      %1739 = vdwg.mxu0
      %1740 = vmatprep.subr.bf16.mxu0 %v1261
      %1741 = vmatpush1.bf16.msra.mxu0 %v1260
      %1742 = vmatprep.subr.bf16.mxu0 %v1265
      %1743 = vmatpush1.bf16.msra.mxu0 %v1264
      %1744 = vmatprep.subr.bf16.mxu0 %v1269
      %1745 = vmatpush1.bf16.msra.mxu0 %v1268
      %1746 = vmatprep.subr.bf16.mxu0 %v1273
      %1747 = vmatpush1.bf16.msra.mxu0 %v1272
      %1748 = vmatprep.subr.bf16.mxu0 %v1277
      %1749 = vmatpush1.bf16.msra.mxu0 %v1276
      %1750 = vmatprep.subr.bf16.mxu0 %v1281
      %1751 = vmatpush1.bf16.msra.mxu0 %v1280
      %1752 = vmatprep.subr.bf16.mxu0 %v1285
      %1753 = vmatpush1.bf16.msra.mxu0 %v1284
      %1754 = vmatprep.subr.bf16.mxu0 %v1289
      %1755 = vmatpush1.bf16.msra.mxu0 %v1288
      %1756 = vmatprep.subr.bf16.mxu0 %v1293
      %1757 = vmatpush1.bf16.msra.mxu0 %v1292
      %1758 = vmatprep.subr.bf16.mxu0 %v1297
      %1759 = vmatpush1.bf16.msra.mxu0 %v1296
      %1760 = vmatprep.subr.bf16.mxu0 %v1301
      %1761 = vmatpush1.bf16.msra.mxu0 %v1300
      %1762 = vmatprep.subr.bf16.mxu0 %v1305
      %1763 = vmatpush1.bf16.msra.mxu0 %v1304
      %1764 = vmatprep.subr.bf16.mxu0 %v1309
      %1765 = vmatpush1.bf16.msra.mxu0 %v1308
      %1766 = vmatprep.subr.bf16.mxu0 %v1313
      %1767 = vmatpush1.bf16.msra.mxu0 %v1312
      %1768 = vmatprep.subr.bf16.mxu0 %v1317
      %1769 = vmatpush1.bf16.msra.mxu0 %v1316
      %1770 = vmatprep.subr.bf16.mxu0 %v1321
      %1771 = vmatpush1.bf16.msra.mxu0 %v1320
      %1772 = vmatprep.mubr.bf16.mxu0 %v693
      %1773 = vmatmul.mubr.bf16.gmra.mrb[0].mxu0 %v692
      %v1774 = vpop.f32.mrb[0].mxu0
      %v1775 = vadd.f32 %v865, %v1774
      %v1776 = vpop.f32.mrb[0].mxu0
      %v1777 = vadd.f32 %v869, %v1776
      %v1778 = vpop.f32.mrb[0].mxu0
      %v1779 = vadd.f32 %v865, %v1778
      %v1780 = vpop.f32.mrb[0].mxu0
      %v1781 = vadd.f32 %v869, %v1780
      %1782 = vmatprep.mubr.bf16.mxu0 %v697
      %1783 = vmatmul.mubr.bf16.gmra.mrb[0].mxu0 %v696
      %v1784 = vpop.f32.mrb[0].mxu0
      %v1785 = vadd.f32 %v865, %v1784
      %v1786 = vpop.f32.mrb[0].mxu0
      %v1787 = vadd.f32 %v869, %v1786
      %v1788 = vpop.f32.mrb[0].mxu0
      %v1789 = vadd.f32 %v865, %v1788
      %v1790 = vpop.f32.mrb[0].mxu0
      %v1791 = vadd.f32 %v869, %v1790
      %1792 = vmatprep.mubr.bf16.mxu0 %v701
      %1793 = vmatmul.mubr.bf16.gmra.mrb[0].mxu0 %v700
      %v1794 = vpop.f32.mrb[0].mxu0
      %v1795 = vadd.f32 %v865, %v1794
      %v1796 = vpop.f32.mrb[0].mxu0
      %v1797 = vadd.f32 %v869, %v1796
      %v1798 = vpop.f32.mrb[0].mxu0
      %v1799 = vadd.f32 %v865, %v1798
      %v1800 = vpop.f32.mrb[0].mxu0
      %v1801 = vadd.f32 %v869, %v1800
      %1802 = vmatprep.mubr.bf16.mxu0 %v705
      %1803 = vmatmul.mubr.bf16.gmra.mrb[0].mxu0 %v704
      %v1804 = vpop.f32.mrb[0].mxu0
      %v1805 = vadd.f32 %v865, %v1804
      %v1806 = vpop.f32.mrb[0].mxu0
      %v1807 = vadd.f32 %v869, %v1806
      %v1808 = vpop.f32.mrb[0].mxu0
      %v1809 = vadd.f32 %v865, %v1808
      %v1810 = vpop.f32.mrb[0].mxu0
      %v1811 = vadd.f32 %v869, %v1810
      %1812 = vmatprep.mubr.bf16.mxu0 %v709
      %1813 = vmatmul.mubr.bf16.gmra.mrb[0].mxu0 %v708
      %v1814 = vpop.f32.mrb[0].mxu0
      %v1815 = vadd.f32 %v865, %v1814
      %v1816 = vpop.f32.mrb[0].mxu0
      %v1817 = vadd.f32 %v869, %v1816
      %v1818 = vpop.f32.mrb[0].mxu0
      %v1819 = vadd.f32 %v865, %v1818
      %v1820 = vpop.f32.mrb[0].mxu0
      %v1821 = vadd.f32 %v869, %v1820
      %1822 = vmatprep.mubr.bf16.mxu0 %v713
      %1823 = vmatmul.mubr.bf16.gmra.mrb[0].mxu0 %v712
      %v1824 = vpop.f32.mrb[0].mxu0
      %v1825 = vadd.f32 %v865, %v1824
      %v1826 = vpop.f32.mrb[0].mxu0
      %v1827 = vadd.f32 %v869, %v1826
      %v1828 = vpop.f32.mrb[0].mxu0
      %v1829 = vadd.f32 %v865, %v1828
      %v1830 = vpop.f32.mrb[0].mxu0
      %v1831 = vadd.f32 %v869, %v1830
      %1832 = vmatprep.mubr.bf16.mxu0 %v717
      %1833 = vmatmul.mubr.bf16.gmra.mrb[0].mxu0 %v716
      %v1834 = vpop.f32.mrb[0].mxu0
      %v1835 = vadd.f32 %v865, %v1834
      %v1836 = vpop.f32.mrb[0].mxu0
      %v1837 = vadd.f32 %v869, %v1836
      %v1838 = vpop.f32.mrb[0].mxu0
      %v1839 = vadd.f32 %v865, %v1838
      %v1840 = vpop.f32.mrb[0].mxu0
      %v1841 = vadd.f32 %v869, %v1840
      %1842 = vmatprep.mubr.bf16.mxu0 %v721
      %1843 = vmatmul.mubr.bf16.gmra.mrb[0].mxu0 %v720
      %v1844 = vpop.f32.mrb[0].mxu0
      %v1845 = vadd.f32 %v865, %v1844
      %v1846 = vpop.f32.mrb[0].mxu0
      %v1847 = vadd.f32 %v869, %v1846
      %v1848 = vpop.f32.mrb[0].mxu0
      %v1849 = vadd.f32 %v865, %v1848
      %v1850 = vpop.f32.mrb[0].mxu0
      %v1851 = vadd.f32 %v869, %v1850
      %1852 = vdwg.mxu0
      %1853 = vmatprep.subr.bf16.mxu0 %v1325
      %1854 = vmatpush1.bf16.msra.mxu0 %v1324
      %1855 = vmatprep.subr.bf16.mxu0 %v1329
      %1856 = vmatpush1.bf16.msra.mxu0 %v1328
      %1857 = vmatprep.subr.bf16.mxu0 %v1333
      %1858 = vmatpush1.bf16.msra.mxu0 %v1332
      %1859 = vmatprep.subr.bf16.mxu0 %v1337
      %1860 = vmatpush1.bf16.msra.mxu0 %v1336
      %1861 = vmatprep.subr.bf16.mxu0 %v1341
      %1862 = vmatpush1.bf16.msra.mxu0 %v1340
      %1863 = vmatprep.subr.bf16.mxu0 %v1345
      %1864 = vmatpush1.bf16.msra.mxu0 %v1344
      %1865 = vmatprep.subr.bf16.mxu0 %v1349
      %1866 = vmatpush1.bf16.msra.mxu0 %v1348
      %1867 = vmatprep.subr.bf16.mxu0 %v1353
      %1868 = vmatpush1.bf16.msra.mxu0 %v1352
      %1869 = vmatprep.subr.bf16.mxu0 %v1357
      %1870 = vmatpush1.bf16.msra.mxu0 %v1356
      %1871 = vmatprep.subr.bf16.mxu0 %v1361
      %1872 = vmatpush1.bf16.msra.mxu0 %v1360
      %1873 = vmatprep.subr.bf16.mxu0 %v1365
      %1874 = vmatpush1.bf16.msra.mxu0 %v1364
      %1875 = vmatprep.subr.bf16.mxu0 %v1369
      %1876 = vmatpush1.bf16.msra.mxu0 %v1368
      %1877 = vmatprep.subr.bf16.mxu0 %v1373
      %1878 = vmatpush1.bf16.msra.mxu0 %v1372
      %1879 = vmatprep.subr.bf16.mxu0 %v1377
      %1880 = vmatpush1.bf16.msra.mxu0 %v1376
      %1881 = vmatprep.subr.bf16.mxu0 %v1381
      %1882 = vmatpush1.bf16.msra.mxu0 %v1380
      %1883 = vmatprep.subr.bf16.mxu0 %v1385
      %1884 = vmatpush1.bf16.msra.mxu0 %v1384
      %1885 = vmatprep.mubr.bf16.mxu0 %v695
      %1886 = vmatmul.mubr.bf16.gmra.mrb[0].mxu0 %v694
      %v1887 = vpop.f32.mrb[0].mxu0
      %v1888 = vadd.f32 %v1775, %v1887
      %v1889 = vpop.f32.mrb[0].mxu0
      %v1890 = vadd.f32 %v1777, %v1889
      %v1891 = vpop.f32.mrb[0].mxu0
      %v1892 = vadd.f32 %v1779, %v1891
      %v1893 = vpop.f32.mrb[0].mxu0
      %v1894 = vadd.f32 %v1781, %v1893
      %1895 = vmatprep.mubr.bf16.mxu0 %v699
      %1896 = vmatmul.mubr.bf16.gmra.mrb[0].mxu0 %v698
      %v1897 = vpop.f32.mrb[0].mxu0
      %v1898 = vadd.f32 %v1785, %v1897
      %v1899 = vpop.f32.mrb[0].mxu0
      %v1900 = vadd.f32 %v1787, %v1899
      %v1901 = vpop.f32.mrb[0].mxu0
      %v1902 = vadd.f32 %v1789, %v1901
      %v1903 = vpop.f32.mrb[0].mxu0
      %v1904 = vadd.f32 %v1791, %v1903
      %1905 = vmatprep.mubr.bf16.mxu0 %v703
      %1906 = vmatmul.mubr.bf16.gmra.mrb[0].mxu0 %v702
      %v1907 = vpop.f32.mrb[0].mxu0
      %v1908 = vadd.f32 %v1795, %v1907
      %v1909 = vpop.f32.mrb[0].mxu0
      %v1910 = vadd.f32 %v1797, %v1909
      %v1911 = vpop.f32.mrb[0].mxu0
      %v1912 = vadd.f32 %v1799, %v1911
      %v1913 = vpop.f32.mrb[0].mxu0
      %v1914 = vadd.f32 %v1801, %v1913
      %1915 = vmatprep.mubr.bf16.mxu0 %v707
      %1916 = vmatmul.mubr.bf16.gmra.mrb[0].mxu0 %v706
      %v1917 = vpop.f32.mrb[0].mxu0
      %v1918 = vadd.f32 %v1805, %v1917
      %v1919 = vpop.f32.mrb[0].mxu0
      %v1920 = vadd.f32 %v1807, %v1919
      %v1921 = vpop.f32.mrb[0].mxu0
      %v1922 = vadd.f32 %v1809, %v1921
      %v1923 = vpop.f32.mrb[0].mxu0
      %v1924 = vadd.f32 %v1811, %v1923
      %1925 = vmatprep.mubr.bf16.mxu0 %v711
      %1926 = vmatmul.mubr.bf16.gmra.mrb[0].mxu0 %v710
      %v1927 = vpop.f32.mrb[0].mxu0
      %v1928 = vadd.f32 %v1815, %v1927
      %v1929 = vpop.f32.mrb[0].mxu0
      %v1930 = vadd.f32 %v1817, %v1929
      %v1931 = vpop.f32.mrb[0].mxu0
      %v1932 = vadd.f32 %v1819, %v1931
      %v1933 = vpop.f32.mrb[0].mxu0
      %v1934 = vadd.f32 %v1821, %v1933
      %1935 = vmatprep.mubr.bf16.mxu0 %v715
      %1936 = vmatmul.mubr.bf16.gmra.mrb[0].mxu0 %v714
      %v1937 = vpop.f32.mrb[0].mxu0
      %v1938 = vadd.f32 %v1825, %v1937
      %v1939 = vpop.f32.mrb[0].mxu0
      %v1940 = vadd.f32 %v1827, %v1939
      %v1941 = vpop.f32.mrb[0].mxu0
      %v1942 = vadd.f32 %v1829, %v1941
      %v1943 = vpop.f32.mrb[0].mxu0
      %v1944 = vadd.f32 %v1831, %v1943
      %1945 = vmatprep.mubr.bf16.mxu0 %v719
      %1946 = vmatmul.mubr.bf16.gmra.mrb[0].mxu0 %v718
      %v1947 = vpop.f32.mrb[0].mxu0
      %v1948 = vadd.f32 %v1835, %v1947
      %v1949 = vpop.f32.mrb[0].mxu0
      %v1950 = vadd.f32 %v1837, %v1949
      %v1951 = vpop.f32.mrb[0].mxu0
      %v1952 = vadd.f32 %v1839, %v1951
      %v1953 = vpop.f32.mrb[0].mxu0
      %v1954 = vadd.f32 %v1841, %v1953
      %1955 = vmatprep.mubr.bf16.mxu0 %v723
      %1956 = vmatmul.mubr.bf16.gmra.mrb[0].mxu0 %v722
      %v1957 = vpop.f32.mrb[0].mxu0
      %v1958 = vadd.f32 %v1845, %v1957
      %v1959 = vpop.f32.mrb[0].mxu0
      %v1960 = vadd.f32 %v1847, %v1959
      %v1961 = vpop.f32.mrb[0].mxu0
      %v1962 = vadd.f32 %v1849, %v1961
      %v1963 = vpop.f32.mrb[0].mxu0
      %v1964 = vadd.f32 %v1851, %v1963
      %1965 = vdwg.mxu0
      %v1966 = vmax.f32 %v1662, 0.0
      %v1967 = vmax.f32 %v1664, 0.0
      %v1968 = vmax.f32 %v1888, 0.0
      %v1969 = vmax.f32 %v1890, 0.0
      %v1970 = vmax.f32 %v1666, 0.0
      %v1971 = vmax.f32 %v1668, 0.0
      %v1972 = vmax.f32 %v1892, 0.0
      %v1973 = vmax.f32 %v1894, 0.0
      %v1974 = vmax.f32 %v1672, 0.0
      %v1975 = vmax.f32 %v1674, 0.0
      %v1976 = vmax.f32 %v1898, 0.0
      %v1977 = vmax.f32 %v1900, 0.0
      %v1978 = vmax.f32 %v1676, 0.0
      %v1979 = vmax.f32 %v1678, 0.0
      %v1980 = vmax.f32 %v1902, 0.0
      %v1981 = vmax.f32 %v1904, 0.0
      %v1982 = vmax.f32 %v1682, 0.0
      %v1983 = vmax.f32 %v1684, 0.0
      %v1984 = vmax.f32 %v1908, 0.0
      %v1985 = vmax.f32 %v1910, 0.0
      %v1986 = vmax.f32 %v1686, 0.0
      %v1987 = vmax.f32 %v1688, 0.0
      %v1988 = vmax.f32 %v1912, 0.0
      %v1989 = vmax.f32 %v1914, 0.0
      %v1990 = vmax.f32 %v1692, 0.0
      %v1991 = vmax.f32 %v1694, 0.0
      %v1992 = vmax.f32 %v1918, 0.0
      %v1993 = vmax.f32 %v1920, 0.0
      %v1994 = vmax.f32 %v1696, 0.0
      %v1995 = vmax.f32 %v1698, 0.0
      %v1996 = vmax.f32 %v1922, 0.0
      %v1997 = vmax.f32 %v1924, 0.0
      %v1998 = vmax.f32 %v1702, 0.0
      %v1999 = vmax.f32 %v1704, 0.0
      %v2000 = vmax.f32 %v1928, 0.0
      %v2001 = vmax.f32 %v1930, 0.0
      %v2002 = vmax.f32 %v1706, 0.0
      %v2003 = vmax.f32 %v1708, 0.0
      %v2004 = vmax.f32 %v1932, 0.0
      %v2005 = vmax.f32 %v1934, 0.0
      %v2006 = vmax.f32 %v1712, 0.0
      %v2007 = vmax.f32 %v1714, 0.0
      %v2008 = vmax.f32 %v1938, 0.0
      %v2009 = vmax.f32 %v1940, 0.0
      %v2010 = vmax.f32 %v1716, 0.0
      %v2011 = vmax.f32 %v1718, 0.0
      %v2012 = vmax.f32 %v1942, 0.0
      %v2013 = vmax.f32 %v1944, 0.0
      %v2014 = vmax.f32 %v1722, 0.0
      %v2015 = vmax.f32 %v1724, 0.0
      %v2016 = vmax.f32 %v1948, 0.0
      %v2017 = vmax.f32 %v1950, 0.0
      %v2018 = vmax.f32 %v1726, 0.0
      %v2019 = vmax.f32 %v1728, 0.0
      %v2020 = vmax.f32 %v1952, 0.0
      %v2021 = vmax.f32 %v1954, 0.0
      %v2022 = vmax.f32 %v1732, 0.0
      %v2023 = vmax.f32 %v1734, 0.0
      %v2024 = vmax.f32 %v1958, 0.0
      %v2025 = vmax.f32 %v1960, 0.0
      %v2026 = vmax.f32 %v1736, 0.0
      %v2027 = vmax.f32 %v1738, 0.0
      %v2028 = vmax.f32 %v1962, 0.0
      %v2029 = vmax.f32 %v1964, 0.0
      %v2030 = vpack.c.bf16 %v1970, %v1966
      %v2031 = vpack.c.bf16 %v1971, %v1967
      %v2032 = vpack.c.bf16 %v1972, %v1968
      %v2033 = vpack.c.bf16 %v1973, %v1969
      %v2034 = vpack.c.bf16 %v1978, %v1974
      %v2035 = vpack.c.bf16 %v1979, %v1975
      %v2036 = vpack.c.bf16 %v1980, %v1976
      %v2037 = vpack.c.bf16 %v1981, %v1977
      %v2038 = vpack.c.bf16 %v1986, %v1982
      %v2039 = vpack.c.bf16 %v1987, %v1983
      %v2040 = vpack.c.bf16 %v1988, %v1984
      %v2041 = vpack.c.bf16 %v1989, %v1985
      %v2042 = vpack.c.bf16 %v1994, %v1990
      %v2043 = vpack.c.bf16 %v1995, %v1991
      %v2044 = vpack.c.bf16 %v1996, %v1992
      %v2045 = vpack.c.bf16 %v1997, %v1993
      %v2046 = vpack.c.bf16 %v2002, %v1998
      %v2047 = vpack.c.bf16 %v2003, %v1999
      %v2048 = vpack.c.bf16 %v2004, %v2000
      %v2049 = vpack.c.bf16 %v2005, %v2001
      %v2050 = vpack.c.bf16 %v2010, %v2006
      %v2051 = vpack.c.bf16 %v2011, %v2007
      %v2052 = vpack.c.bf16 %v2012, %v2008
      %v2053 = vpack.c.bf16 %v2013, %v2009
      %v2054 = vpack.c.bf16 %v2018, %v2014
      %v2055 = vpack.c.bf16 %v2019, %v2015
      %v2056 = vpack.c.bf16 %v2020, %v2016
      %v2057 = vpack.c.bf16 %v2021, %v2017
      %v2058 = vpack.c.bf16 %v2026, %v2022
      %v2059 = vpack.c.bf16 %v2027, %v2023
      %v2060 = vpack.c.bf16 %v2028, %v2024
      %v2061 = vpack.c.bf16 %v2029, %v2025
      %v2062 = vld [vmem:[%s5] sm:$0xf]
      %v2063 = vld [vmem:[%s5 + $0x4] sm:$0xf]
      %v2064 = vld [vmem:[%s5 + $0x8] sm:$0xf]
      %v2065 = vld [vmem:[%s5 + $0xc] sm:$0xf]
      %v2066 = vld [vmem:[%s5 + $0x10] sm:$0xf]
      %v2067 = vld [vmem:[%s5 + $0x14] sm:$0xf]
      %v2068 = vld [vmem:[%s5 + $0x18] sm:$0xf]
      %v2069 = vld [vmem:[%s5 + $0x1c] sm:$0xf]
      %v2070 = vld [vmem:[%s5 + $0x20] sm:$0xf]
      %v2071 = vld [vmem:[%s5 + $0x24] sm:$0xf]
      %v2072 = vld [vmem:[%s5 + $0x28] sm:$0xf]
      %v2073 = vld [vmem:[%s5 + $0x2c] sm:$0xf]
      %v2074 = vld [vmem:[%s5 + $0x30] sm:$0xf]
      %v2075 = vld [vmem:[%s5 + $0x34] sm:$0xf]
      %v2076 = vld [vmem:[%s5 + $0x38] sm:$0xf]
      %v2077 = vld [vmem:[%s5 + $0x3c] sm:$0xf]
      %v2078 = vld [vmem:[%s5 + $0x40] sm:$0xf]
      %v2079 = vld [vmem:[%s5 + $0x44] sm:$0xf]
      %v2080 = vld [vmem:[%s5 + $0x48] sm:$0xf]
      %v2081 = vld [vmem:[%s5 + $0x4c] sm:$0xf]
      %v2082 = vld [vmem:[%s5 + $0x50] sm:$0xf]
      %v2083 = vld [vmem:[%s5 + $0x54] sm:$0xf]
      %v2084 = vld [vmem:[%s5 + $0x58] sm:$0xf]
      %v2085 = vld [vmem:[%s5 + $0x5c] sm:$0xf]
      %v2086 = vld [vmem:[%s5 + $0x60] sm:$0xf]
      %v2087 = vld [vmem:[%s5 + $0x64] sm:$0xf]
      %v2088 = vld [vmem:[%s5 + $0x68] sm:$0xf]
      %v2089 = vld [vmem:[%s5 + $0x6c] sm:$0xf]
      %v2090 = vld [vmem:[%s5 + $0x70] sm:$0xf]
      %v2091 = vld [vmem:[%s5 + $0x74] sm:$0xf]
      %v2092 = vld [vmem:[%s5 + $0x78] sm:$0xf]
      %v2093 = vld [vmem:[%s5 + $0x7c] sm:$0xf]
      %v2094 = vld [vmem:[%s5 + $0x80] sm:$0xf]
      %v2095 = vld [vmem:[%s5 + $0x84] sm:$0xf]
      %v2096 = vld [vmem:[%s5 + $0x88] sm:$0xf]
      %v2097 = vld [vmem:[%s5 + $0x8c] sm:$0xf]
      %v2098 = vld [vmem:[%s5 + $0x90] sm:$0xf]
      %v2099 = vld [vmem:[%s5 + $0x94] sm:$0xf]
      %v2100 = vld [vmem:[%s5 + $0x98] sm:$0xf]
      %v2101 = vld [vmem:[%s5 + $0x9c] sm:$0xf]
      %v2102 = vld [vmem:[%s5 + $0xa0] sm:$0xf]
      %v2103 = vld [vmem:[%s5 + $0xa4] sm:$0xf]
      %v2104 = vld [vmem:[%s5 + $0xa8] sm:$0xf]
      %v2105 = vld [vmem:[%s5 + $0xac] sm:$0xf]
      %v2106 = vld [vmem:[%s5 + $0xb0] sm:$0xf]
      %v2107 = vld [vmem:[%s5 + $0xb4] sm:$0xf]
      %v2108 = vld [vmem:[%s5 + $0xb8] sm:$0xf]
      %v2109 = vld [vmem:[%s5 + $0xbc] sm:$0xf]
      %v2110 = vld [vmem:[%s5 + $0xc0] sm:$0xf]
      %v2111 = vld [vmem:[%s5 + $0xc4] sm:$0xf]
      %v2112 = vld [vmem:[%s5 + $0xc8] sm:$0xf]
      %v2113 = vld [vmem:[%s5 + $0xcc] sm:$0xf]
      %v2114 = vld [vmem:[%s5 + $0xd0] sm:$0xf]
      %v2115 = vld [vmem:[%s5 + $0xd4] sm:$0xf]
      %v2116 = vld [vmem:[%s5 + $0xd8] sm:$0xf]
      %v2117 = vld [vmem:[%s5 + $0xdc] sm:$0xf]
      %v2118 = vld [vmem:[%s5 + $0xe0] sm:$0xf]
      %v2119 = vld [vmem:[%s5 + $0xe4] sm:$0xf]
      %v2120 = vld [vmem:[%s5 + $0xe8] sm:$0xf]
      %v2121 = vld [vmem:[%s5 + $0xec] sm:$0xf]
      %v2122 = vld [vmem:[%s5 + $0xf0] sm:$0xf]
      %v2123 = vld [vmem:[%s5 + $0xf4] sm:$0xf]
      %v2124 = vld [vmem:[%s5 + $0xf8] sm:$0xf]
      %v2125 = vld [vmem:[%s5 + $0xfc] sm:$0xf]
      %v2126 = vld [vmem:[%s6] sm:$0x1]
      %v2128 = vlaneseq
      %v2129 = vshrl.u32 %v2128, 7
      %v2130 = vsub.s32 0, %v2129
      %v2131 = vrot.slane %v2126, %v2130
      %v2197 = vunpack.c.l.b16 %v2062
      %v2198 = vunpack.c.l.b16 %v2063
      %v2199 = vunpack.c.l.b16 %v2064
      %v2200 = vunpack.c.l.b16 %v2065
      %v2201 = vunpack.c.l.b16 %v2066
      %v2202 = vunpack.c.l.b16 %v2067
      %v2203 = vunpack.c.l.b16 %v2068
      %v2204 = vunpack.c.l.b16 %v2069
      %v2205 = vunpack.c.l.b16 %v2070
      %v2206 = vunpack.c.l.b16 %v2071
      %v2207 = vunpack.c.l.b16 %v2072
      %v2208 = vunpack.c.l.b16 %v2073
      %v2209 = vunpack.c.l.b16 %v2074
      %v2210 = vunpack.c.l.b16 %v2075
      %v2211 = vunpack.c.l.b16 %v2076
      %v2212 = vunpack.c.l.b16 %v2077
      %v2213 = vunpack.c.l.b16 %v2078
      %v2214 = vunpack.c.l.b16 %v2079
      %v2215 = vunpack.c.l.b16 %v2080
      %v2216 = vunpack.c.l.b16 %v2081
      %v2217 = vunpack.c.l.b16 %v2082
      %v2218 = vunpack.c.l.b16 %v2083
      %v2219 = vunpack.c.l.b16 %v2084
      %v2220 = vunpack.c.l.b16 %v2085
      %v2221 = vunpack.c.l.b16 %v2086
      %v2222 = vunpack.c.l.b16 %v2087
      %v2223 = vunpack.c.l.b16 %v2088
      %v2224 = vunpack.c.l.b16 %v2089
      %v2225 = vunpack.c.l.b16 %v2090
      %v2226 = vunpack.c.l.b16 %v2091
      %v2227 = vunpack.c.l.b16 %v2092
      %v2228 = vunpack.c.l.b16 %v2093
      %v2229 = vunpack.c.l.b16 %v2094
      %v2230 = vunpack.c.l.b16 %v2095
      %v2231 = vunpack.c.l.b16 %v2096
      %v2232 = vunpack.c.l.b16 %v2097
      %v2233 = vunpack.c.l.b16 %v2098
      %v2234 = vunpack.c.l.b16 %v2099
      %v2235 = vunpack.c.l.b16 %v2100
      %v2236 = vunpack.c.l.b16 %v2101
      %v2237 = vunpack.c.l.b16 %v2102
      %v2238 = vunpack.c.l.b16 %v2103
      %v2239 = vunpack.c.l.b16 %v2104
      %v2240 = vunpack.c.l.b16 %v2105
      %v2241 = vunpack.c.l.b16 %v2106
      %v2242 = vunpack.c.l.b16 %v2107
      %v2243 = vunpack.c.l.b16 %v2108
      %v2244 = vunpack.c.l.b16 %v2109
      %v2245 = vunpack.c.l.b16 %v2110
      %v2246 = vunpack.c.l.b16 %v2111
      %v2247 = vunpack.c.l.b16 %v2112
      %v2248 = vunpack.c.l.b16 %v2113
      %v2249 = vunpack.c.l.b16 %v2114
      %v2250 = vunpack.c.l.b16 %v2115
      %v2251 = vunpack.c.l.b16 %v2116
      %v2252 = vunpack.c.l.b16 %v2117
      %v2253 = vunpack.c.l.b16 %v2118
      %v2254 = vunpack.c.l.b16 %v2119
      %v2255 = vunpack.c.l.b16 %v2120
      %v2256 = vunpack.c.l.b16 %v2121
      %v2257 = vunpack.c.l.b16 %v2122
      %v2258 = vunpack.c.l.b16 %v2123
      %v2259 = vunpack.c.l.b16 %v2124
      %v2260 = vunpack.c.l.b16 %v2125
      %v2261 = vpack.c.b16 %v2198, %v2197
      %v2262 = vpack.c.b16 %v2200, %v2199
      %v2263 = vpack.c.b16 %v2202, %v2201
      %v2264 = vpack.c.b16 %v2204, %v2203
      %v2265 = vpack.c.b16 %v2206, %v2205
      %v2266 = vpack.c.b16 %v2208, %v2207
      %v2267 = vpack.c.b16 %v2210, %v2209
      %v2268 = vpack.c.b16 %v2212, %v2211
      %v2269 = vpack.c.b16 %v2214, %v2213
      %v2270 = vpack.c.b16 %v2216, %v2215
      %v2271 = vpack.c.b16 %v2218, %v2217
      %v2272 = vpack.c.b16 %v2220, %v2219
      %v2273 = vpack.c.b16 %v2222, %v2221
      %v2274 = vpack.c.b16 %v2224, %v2223
      %v2275 = vpack.c.b16 %v2226, %v2225
      %v2276 = vpack.c.b16 %v2228, %v2227
      %v2277 = vpack.c.b16 %v2230, %v2229
      %v2278 = vpack.c.b16 %v2232, %v2231
      %v2279 = vpack.c.b16 %v2234, %v2233
      %v2280 = vpack.c.b16 %v2236, %v2235
      %v2281 = vpack.c.b16 %v2238, %v2237
      %v2282 = vpack.c.b16 %v2240, %v2239
      %v2283 = vpack.c.b16 %v2242, %v2241
      %v2284 = vpack.c.b16 %v2244, %v2243
      %v2285 = vpack.c.b16 %v2246, %v2245
      %v2286 = vpack.c.b16 %v2248, %v2247
      %v2287 = vpack.c.b16 %v2250, %v2249
      %v2288 = vpack.c.b16 %v2252, %v2251
      %v2289 = vpack.c.b16 %v2254, %v2253
      %v2290 = vpack.c.b16 %v2256, %v2255
      %v2291 = vpack.c.b16 %v2258, %v2257
      %v2292 = vpack.c.b16 %v2260, %v2259
      %2325 = vmatprep.subr.bf16.mxu0 0
      %2326 = vmatpush1.bf16.msra.mxu0 %v2261
      %2327 = vmatprep.subr.bf16.mxu0 0
      %2328 = vmatpush1.bf16.msra.mxu0 %v2262
      %2329 = vmatprep.subr.bf16.mxu0 0
      %2330 = vmatpush1.bf16.msra.mxu0 %v2263
      %2331 = vmatprep.subr.bf16.mxu0 0
      %2332 = vmatpush1.bf16.msra.mxu0 %v2264
      %2333 = vmatprep.subr.bf16.mxu0 0
      %2334 = vmatpush1.bf16.msra.mxu0 %v2265
      %2335 = vmatprep.subr.bf16.mxu0 0
      %2336 = vmatpush1.bf16.msra.mxu0 %v2266
      %2337 = vmatprep.subr.bf16.mxu0 0
      %2338 = vmatpush1.bf16.msra.mxu0 %v2267
      %2339 = vmatprep.subr.bf16.mxu0 0
      %2340 = vmatpush1.bf16.msra.mxu0 %v2268
      %2341 = vmatprep.subr.bf16.mxu0 0
      %2342 = vmatpush1.bf16.msra.mxu0 %v2269
      %2343 = vmatprep.subr.bf16.mxu0 0
      %2344 = vmatpush1.bf16.msra.mxu0 %v2270
      %2345 = vmatprep.subr.bf16.mxu0 0
      %2346 = vmatpush1.bf16.msra.mxu0 %v2271
      %2347 = vmatprep.subr.bf16.mxu0 0
      %2348 = vmatpush1.bf16.msra.mxu0 %v2272
      %2349 = vmatprep.subr.bf16.mxu0 0
      %2350 = vmatpush1.bf16.msra.mxu0 %v2273
      %2351 = vmatprep.subr.bf16.mxu0 0
      %2352 = vmatpush1.bf16.msra.mxu0 %v2274
      %2353 = vmatprep.subr.bf16.mxu0 0
      %2354 = vmatpush1.bf16.msra.mxu0 %v2275
      %2355 = vmatprep.subr.bf16.mxu0 0
      %2356 = vmatpush1.bf16.msra.mxu0 %v2276
      %2357 = vmatprep.mubr.bf16.mxu0 %v2031
      %2358 = vmatmul.mubr.bf16.gmra.mrb[0].mxu0 %v2030
      %v2359 = vpop.f32.mrb[0].mxu0
      %v2360 = vadd.f32 %v2131, %v2359
      %v2361 = vpop.f32.mrb[0].mxu0
      %v2362 = vpop.f32.mrb[0].mxu0
      %v2363 = vadd.f32 %v2131, %v2362
      %v2364 = vpop.f32.mrb[0].mxu0
      %2365 = vmatprep.mubr.bf16.mxu0 %v2035
      %2366 = vmatmul.mubr.bf16.gmra.mrb[0].mxu0 %v2034
      %v2367 = vpop.f32.mrb[0].mxu0
      %v2368 = vadd.f32 %v2131, %v2367
      %v2369 = vpop.f32.mrb[0].mxu0
      %v2370 = vpop.f32.mrb[0].mxu0
      %v2371 = vadd.f32 %v2131, %v2370
      %v2372 = vpop.f32.mrb[0].mxu0
      %2373 = vmatprep.mubr.bf16.mxu0 %v2039
      %2374 = vmatmul.mubr.bf16.gmra.mrb[0].mxu0 %v2038
      %v2375 = vpop.f32.mrb[0].mxu0
      %v2376 = vadd.f32 %v2131, %v2375
      %v2377 = vpop.f32.mrb[0].mxu0
      %v2378 = vpop.f32.mrb[0].mxu0
      %v2379 = vadd.f32 %v2131, %v2378
      %v2380 = vpop.f32.mrb[0].mxu0
      %2381 = vmatprep.mubr.bf16.mxu0 %v2043
      %2382 = vmatmul.mubr.bf16.gmra.mrb[0].mxu0 %v2042
      %v2383 = vpop.f32.mrb[0].mxu0
      %v2384 = vadd.f32 %v2131, %v2383
      %v2385 = vpop.f32.mrb[0].mxu0
      %v2386 = vpop.f32.mrb[0].mxu0
      %v2387 = vadd.f32 %v2131, %v2386
      %v2388 = vpop.f32.mrb[0].mxu0
      %2389 = vmatprep.mubr.bf16.mxu0 %v2047
      %2390 = vmatmul.mubr.bf16.gmra.mrb[0].mxu0 %v2046
      %v2391 = vpop.f32.mrb[0].mxu0
      %v2392 = vadd.f32 %v2131, %v2391
      %v2393 = vpop.f32.mrb[0].mxu0
      %v2394 = vpop.f32.mrb[0].mxu0
      %v2395 = vadd.f32 %v2131, %v2394
      %v2396 = vpop.f32.mrb[0].mxu0
      %2397 = vmatprep.mubr.bf16.mxu0 %v2051
      %2398 = vmatmul.mubr.bf16.gmra.mrb[0].mxu0 %v2050
      %v2399 = vpop.f32.mrb[0].mxu0
      %v2400 = vadd.f32 %v2131, %v2399
      %v2401 = vpop.f32.mrb[0].mxu0
      %v2402 = vpop.f32.mrb[0].mxu0
      %v2403 = vadd.f32 %v2131, %v2402
      %v2404 = vpop.f32.mrb[0].mxu0
      %2405 = vmatprep.mubr.bf16.mxu0 %v2055
      %2406 = vmatmul.mubr.bf16.gmra.mrb[0].mxu0 %v2054
      %v2407 = vpop.f32.mrb[0].mxu0
      %v2408 = vadd.f32 %v2131, %v2407
      %v2409 = vpop.f32.mrb[0].mxu0
      %v2410 = vpop.f32.mrb[0].mxu0
      %v2411 = vadd.f32 %v2131, %v2410
      %v2412 = vpop.f32.mrb[0].mxu0
      %2413 = vmatprep.mubr.bf16.mxu0 %v2059
      %2414 = vmatmul.mubr.bf16.gmra.mrb[0].mxu0 %v2058
      %v2415 = vpop.f32.mrb[0].mxu0
      %v2416 = vadd.f32 %v2131, %v2415
      %v2417 = vpop.f32.mrb[0].mxu0
      %v2418 = vpop.f32.mrb[0].mxu0
      %v2419 = vadd.f32 %v2131, %v2418
      %v2420 = vpop.f32.mrb[0].mxu0
      %2421 = vdwg.mxu0
      %2422 = vmatprep.subr.bf16.mxu0 0
      %2423 = vmatpush1.bf16.msra.mxu0 %v2277
      %2424 = vmatprep.subr.bf16.mxu0 0
      %2425 = vmatpush1.bf16.msra.mxu0 %v2278
      %2426 = vmatprep.subr.bf16.mxu0 0
      %2427 = vmatpush1.bf16.msra.mxu0 %v2279
      %2428 = vmatprep.subr.bf16.mxu0 0
      %2429 = vmatpush1.bf16.msra.mxu0 %v2280
      %2430 = vmatprep.subr.bf16.mxu0 0
      %2431 = vmatpush1.bf16.msra.mxu0 %v2281
      %2432 = vmatprep.subr.bf16.mxu0 0
      %2433 = vmatpush1.bf16.msra.mxu0 %v2282
      %2434 = vmatprep.subr.bf16.mxu0 0
      %2435 = vmatpush1.bf16.msra.mxu0 %v2283
      %2436 = vmatprep.subr.bf16.mxu0 0
      %2437 = vmatpush1.bf16.msra.mxu0 %v2284
      %2438 = vmatprep.subr.bf16.mxu0 0
      %2439 = vmatpush1.bf16.msra.mxu0 %v2285
      %2440 = vmatprep.subr.bf16.mxu0 0
      %2441 = vmatpush1.bf16.msra.mxu0 %v2286
      %2442 = vmatprep.subr.bf16.mxu0 0
      %2443 = vmatpush1.bf16.msra.mxu0 %v2287
      %2444 = vmatprep.subr.bf16.mxu0 0
      %2445 = vmatpush1.bf16.msra.mxu0 %v2288
      %2446 = vmatprep.subr.bf16.mxu0 0
      %2447 = vmatpush1.bf16.msra.mxu0 %v2289
      %2448 = vmatprep.subr.bf16.mxu0 0
      %2449 = vmatpush1.bf16.msra.mxu0 %v2290
      %2450 = vmatprep.subr.bf16.mxu0 0
      %2451 = vmatpush1.bf16.msra.mxu0 %v2291
      %2452 = vmatprep.subr.bf16.mxu0 0
      %2453 = vmatpush1.bf16.msra.mxu0 %v2292
      %2454 = vmatprep.mubr.bf16.mxu0 %v2033
      %2455 = vmatmul.mubr.bf16.gmra.mrb[0].mxu0 %v2032
      %v2456 = vpop.f32.mrb[0].mxu0
      %v2457 = vadd.f32 %v2360, %v2456
      %v2458 = vpop.f32.mrb[0].mxu0
      %v2459 = vpop.f32.mrb[0].mxu0
      %v2460 = vadd.f32 %v2363, %v2459
      %v2461 = vpop.f32.mrb[0].mxu0
      %2462 = vmatprep.mubr.bf16.mxu0 %v2037
      %2463 = vmatmul.mubr.bf16.gmra.mrb[0].mxu0 %v2036
      %v2464 = vpop.f32.mrb[0].mxu0
      %v2465 = vadd.f32 %v2368, %v2464
      %v2466 = vpop.f32.mrb[0].mxu0
      %v2467 = vpop.f32.mrb[0].mxu0
      %v2468 = vadd.f32 %v2371, %v2467
      %v2469 = vpop.f32.mrb[0].mxu0
      %2470 = vmatprep.mubr.bf16.mxu0 %v2041
      %2471 = vmatmul.mubr.bf16.gmra.mrb[0].mxu0 %v2040
      %v2472 = vpop.f32.mrb[0].mxu0
      %v2473 = vadd.f32 %v2376, %v2472
      %v2474 = vpop.f32.mrb[0].mxu0
      %v2475 = vpop.f32.mrb[0].mxu0
      %v2476 = vadd.f32 %v2379, %v2475
      %v2477 = vpop.f32.mrb[0].mxu0
      %2478 = vmatprep.mubr.bf16.mxu0 %v2045
      %2479 = vmatmul.mubr.bf16.gmra.mrb[0].mxu0 %v2044
      %v2480 = vpop.f32.mrb[0].mxu0
      %v2481 = vadd.f32 %v2384, %v2480
      %v2482 = vpop.f32.mrb[0].mxu0
      %v2483 = vpop.f32.mrb[0].mxu0
      %v2484 = vadd.f32 %v2387, %v2483
      %v2485 = vpop.f32.mrb[0].mxu0
      %2486 = vmatprep.mubr.bf16.mxu0 %v2049
      %2487 = vmatmul.mubr.bf16.gmra.mrb[0].mxu0 %v2048
      %v2488 = vpop.f32.mrb[0].mxu0
      %v2489 = vadd.f32 %v2392, %v2488
      %v2490 = vpop.f32.mrb[0].mxu0
      %v2491 = vpop.f32.mrb[0].mxu0
      %v2492 = vadd.f32 %v2395, %v2491
      %v2493 = vpop.f32.mrb[0].mxu0
      %2494 = vmatprep.mubr.bf16.mxu0 %v2053
      %2495 = vmatmul.mubr.bf16.gmra.mrb[0].mxu0 %v2052
      %v2496 = vpop.f32.mrb[0].mxu0
      %v2497 = vadd.f32 %v2400, %v2496
      %v2498 = vpop.f32.mrb[0].mxu0
      %v2499 = vpop.f32.mrb[0].mxu0
      %v2500 = vadd.f32 %v2403, %v2499
      %v2501 = vpop.f32.mrb[0].mxu0
      %2502 = vmatprep.mubr.bf16.mxu0 %v2057
      %2503 = vmatmul.mubr.bf16.gmra.mrb[0].mxu0 %v2056
      %v2504 = vpop.f32.mrb[0].mxu0
      %v2505 = vadd.f32 %v2408, %v2504
      %v2506 = vpop.f32.mrb[0].mxu0
      %v2507 = vpop.f32.mrb[0].mxu0
      %v2508 = vadd.f32 %v2411, %v2507
      %v2509 = vpop.f32.mrb[0].mxu0
      %2510 = vmatprep.mubr.bf16.mxu0 %v2061
      %2511 = vmatmul.mubr.bf16.gmra.mrb[0].mxu0 %v2060
      %v2512 = vpop.f32.mrb[0].mxu0
      %v2513 = vadd.f32 %v2416, %v2512
      %v2514 = vpop.f32.mrb[0].mxu0
      %v2515 = vpop.f32.mrb[0].mxu0
      %v2516 = vadd.f32 %v2419, %v2515
      %v2517 = vpop.f32.mrb[0].mxu0
      %2518 = vdwg.mxu0
      %2519 = vst [vmem:[%s280] sm:$0xff] %v2457
      %2520 = vst [vmem:[%s280 + $0x8] sm:$0xff] %v2460
      %2521 = vst [vmem:[%s280 + $0x10] sm:$0xff] %v2465
      %2522 = vst [vmem:[%s280 + $0x18] sm:$0xff] %v2468
      %2523 = vst [vmem:[%s280 + $0x20] sm:$0xff] %v2473
      %2524 = vst [vmem:[%s280 + $0x28] sm:$0xff] %v2476
      %2525 = vst [vmem:[%s280 + $0x30] sm:$0xff] %v2481
      %2526 = vst [vmem:[%s280 + $0x38] sm:$0xff] %v2484
      %2527 = vst [vmem:[%s280 + $0x40] sm:$0xff] %v2489
      %2528 = vst [vmem:[%s280 + $0x48] sm:$0xff] %v2492
      %2529 = vst [vmem:[%s280 + $0x50] sm:$0xff] %v2497
      %2530 = vst [vmem:[%s280 + $0x58] sm:$0xff] %v2500
      %2531 = vst [vmem:[%s280 + $0x60] sm:$0xff] %v2505
      %2532 = vst [vmem:[%s280 + $0x68] sm:$0xff] %v2508
      %2533 = vst [vmem:[%s280 + $0x70] sm:$0xff] %v2513
      %2534 = vst [vmem:[%s280 + $0x78] sm:$0xff] %v2516
      %s2535 = smul.u32 16, %s18
      %p2536 = scmp.lt.s32.totalorder %s2535, 31
      %s2537 = scalar_select %p2536, %s2535, 31
      %s2538 = smul.addr %s2537, 8
      %s2539 = scalar_lea.vmem %s7, %s2538
      // Predicated region
      $region49: #{cifar10_oracle_forward.1} parent=47 // pred_check
        %p2540 = pneg %p188
      $region50: #{cifar10_oracle_forward.1} parent=47 // pred_check_branch
        %2542 = sbr.rel (%p2540) target = $region52
      $region51: #{cifar10_oracle_forward.1} parent=47 // pred_region
        %s2543 = smul.u32 16, %s18
      $region52: #{cifar10_oracle_forward.1} parent=47 // pred_fallthru
        _
    $region48: #{cifar10_oracle_forward.1} parent=5 // pred_fallthru
      _
    %p2544 = scmp.le.s32.totalorder 2, %s13
    // Predicated region
    $region53: #{cifar10_oracle_forward.1} parent=5 // pred_check
      %p2545 = pneg %p2544
    $region54: #{cifar10_oracle_forward.1} parent=5 // pred_check_branch
      %2547 = sbr.rel (%p2545) target = $region56
    $region55: #{cifar10_oracle_forward.1} parent=5 // pred_region
      %s2548 = ssub.s32 %s13, 2
      // Predicated region
      $region57: #{cifar10_oracle_forward.1} parent=55 // pred_check
        %p2549 = pneg %p194
      $region58: #{cifar10_oracle_forward.1} parent=55 // pred_check_branch
        %2551 = sbr.rel (%p2549) target = $region60
      $region59: #{cifar10_oracle_forward.1} parent=55 // pred_region
        %s2552 = smul.u32 16, %s19
        %p2553 = scmp.lt.s32.totalorder %s2552, 31
        %s2554 = scalar_select %p2553, %s2552, 31
        %s2555 = smul.addr %s2554, 8
        %s2556 = scalar_lea.vmem %s7, %s2555
      $region60: #{cifar10_oracle_forward.1} parent=55 // pred_fallthru
        _
    $region56: #{cifar10_oracle_forward.1} parent=5 // pred_fallthru
      _
  $region6: #{cifar10_oracle_forward.1} parent=0 // loop_footer
    %s17 = sadd.s32 1, %s13
  $region7: #{cifar10_oracle_forward.1} parent=0 // loop_footer_branch
    %12 = sbr.rel target = $region3
  $region8: #{cifar10_oracle_forward.1} parent=0 // loop_exit
    _

</llo_original>
